<compile_context>
chip_gen: v7x
topology: tpu7x:2x2x1
jax: 0.10.0
libtpu: 0.0.40
codegen_flags: <defaults>
</compile_context>

<pallas_src>
import functools

import jax
import jax.numpy as jnp
from jax.experimental import pallas as pl
from jax.experimental.pallas import tpu as pltpu


# ----------------------------- Pallas kernels ------------------------------ #

def conv_stack_kernel(x_ref, w1_ref, b1_ref, w2_ref, b2_ref,
                      w3_ref, b3_ref, w4_ref, b4_ref, o_ref, *, L):
    """Fused conv1(+ReLU), conv2(+ReLU+pool), conv3(+ReLU), conv4(+ReLU+pool).

    Rows are flattened (batch-major, length-minor):
      x_ref  : (nb*L, 1)
      wK_ref : (3*Cin, Cout)   taps stacked on the contraction dim
               (w1_ref is (3, 32) since Cin == 1)
      bK_ref : (1, Cout)
      o_ref  : (nb*L//4, 64)
    """
    x = x_ref[...]                                     # (nb*L, 1)

    def shifts(v, l):
        # zero-padded v[r-1] / v[r+1]; rows at per-sample boundaries masked.
        r = v.shape[0]
        z = jnp.zeros_like(v[:1])
        vm = jnp.concatenate([z, v[:-1]], axis=0)
        vp = jnp.concatenate([v[1:], z], axis=0)
        pos = jax.lax.broadcasted_iota(jnp.int32, (r, 1), 0) % l
        vm = jnp.where(pos == 0, 0.0, vm)
        vp = jnp.where(pos == l - 1, 0.0, vp)
        return vm, vp

    def conv_taps_fused(v, l, w, b, pool):
        # All 3 taps in ONE MXU matmul: (rows, 3*cin) @ (3*cin, cout).
        vm, vp = shifts(v, l)
        xk = jnp.concatenate([vm, v, vp], axis=-1)
        y = jnp.maximum(
            jnp.dot(xk, w, preferred_element_type=jnp.float32) + b, 0.0)
        if pool:                                       # MaxPool1d(2,2) in vregs
            r, c = y.shape
            y = jnp.max(y.reshape(r // 2, 2, c), axis=1)
            l //= 2
        return y, l

    # conv1 (Cin == 1): pure VPU broadcast path, skip the MXU entirely.
    w1 = w1_ref[...]                                   # (3, 32)
    xm, xp = shifts(x, L)
    y = jnp.maximum(xm * w1[0] + x * w1[1] + xp * w1[2] + b1_ref[...], 0.0)

    # conv2..conv4 on the MXU with fused taps.
    y, l = conv_taps_fused(y, L, w2_ref[...], b2_ref[...], pool=True)   # L/2,32
    y, l = conv_taps_fused(y, l, w3_ref[...], b3_ref[...], pool=False)  # L/2,64
    y, _ = conv_taps_fused(y, l, w4_ref[...], b4_ref[...], pool=True)   # L/4,64

    o_ref[...] = y.astype(o_ref.dtype)


def linear_kernel(x_ref, w_ref, b_ref, o_ref, acc_ref, *, relu):
    """One (N_out tile, K tile) step of out = act(x @ w + b)."""
    k = pl.program_id(1)

    @pl.when(k == 0)
    def _init():
        acc_ref[...] = jnp.zeros_like(acc_ref)

    acc_ref[...] += jnp.dot(x_ref[...], w_ref[...],
                            preferred_element_type=jnp.float32)

    @pl.when(k == pl.num_programs(1) - 1)
    def _finalize():
        y = acc_ref[...] + b_ref[...]
        if relu:
            y = jnp.maximum(y, 0.0)
        o_ref[...] = y.astype(o_ref.dtype)


# ------------------------------ Wrappers ----------------------------------- #

def _batch_tile(N, L, target_rows=512):
    """Batch elements per grid step; keeps block sublane dims 8-aligned."""
    l4 = L // 4
    nb = max(1, min(N, target_rows // max(L, 1)))
    while nb > 1 and (N % nb or (nb * l4) % 8):
        nb -= 1
    if N % nb or (nb * l4) % 8:
        nb = N          # full-batch block (block dims == full array dims)
    return nb


def _lane_tile(dim, target):
    """Largest multiple of 128 dividing `dim` (<= target); else the full dim."""
    if dim % 128 != 0:
        return dim
    t = min(dim, max(128, (target // 128) * 128))
    while dim % t:
        t -= 128
    return t


def conv_stack(x_ncl, p):
    """Fused conv1..conv4 (+pools).  x_ncl: (N, 1, L).  Returns (N, L//4, 64)."""
    N, _, L = x_ncl.shape
    assert L % 4 == 0, "L must be divisible by 4 (two MaxPool1d(2,2) stages)"
    nb = _batch_tile(N, L)
    L4 = L // 4
    x2d = x_ncl.reshape(N * L, 1)            # free: C == 1, rows are [n][l]
    w1 = p["w1"].reshape(3, 32)              # Cin == 1
    w2 = p["w2"].reshape(96, 32)             # taps stacked on contraction dim
    w3 = p["w3"].reshape(96, 64)
    w4 = p["w4"].reshape(192, 64)
    args = (x2d, w1, p["b1"], w2, p["b2"], w3, p["b3"], w4, p["b4"])
    in_specs = [pl.BlockSpec((nb * L, 1), lambda i: (i, 0))]
    in_specs += [pl.BlockSpec(a.shape, lambda i: (0, 0)) for a in args[1:]]
    out2d = pl.pallas_call(
        functools.partial(conv_stack_kernel, L=L),
        out_shape=jax.ShapeDtypeStruct((N * L4, 64), jnp.float32),
        grid=(N // nb,),
        in_specs=in_specs,
        out_specs=pl.BlockSpec((nb * L4, 64), lambda i: (i, 0)),
        compiler_params=pltpu.CompilerParams(dimension_semantics=("parallel",)),
    )(*args)
    return out2d.reshape(N, L4, 64)


def linear(x, w, b, *, relu, tk_target=512, tn_target=1024):
    """Tiled act(x @ w + b): grid (N_out tiles, K tiles), f32 VMEM accumulator."""
    M, K = x.shape
    K2, Nout = w.shape
    assert K == K2
    tk = _lane_tile(K, tk_target)
    tn = _lane_tile(Nout, tn_target)
    grid = (Nout // tn, K // tk)
    return pl.pallas_call(
        functools.partial(linear_kernel, relu=relu),
        out_shape=jax.ShapeDtypeStruct((M, Nout), jnp.float32),
        grid=grid,
        in_specs=[
            pl.BlockSpec((M, tk), lambda j, k: (0, k)),
            pl.BlockSpec((tk, tn), lambda j, k: (k, j)),
            pl.BlockSpec((1, tn), lambda j, k: (0, j)),
        ],
        out_specs=pl.BlockSpec((M, tn), lambda j, k: (0, j)),
        scratch_shapes=[pltpu.VMEM((M, tn), jnp.float32)],
        compiler_params=pltpu.CompilerParams(
            dimension_semantics=("parallel", "arbitrary")),
    )(x, w, b)


def cnn_ae_forward(x_ncl, p):
    """x_ncl: (N, 1, L) -- PyTorch Conv1d layout."""
    N, _, L = x_ncl.shape
    y = conv_stack(x_ncl, p)                     # (N, L/4, 64)  NLC
    y_ncl = jnp.transpose(y, (0, 2, 1))          # (N, 64, L/4)  == torch layout
    flat = y_ncl.reshape(-1, N * 64)             # == y.view(-1, N*64)
    h = linear(flat, p["fw1"], p["fb1"], relu=True)
    h = linear(h, p["fw2"], p["fb2"], relu=True)
    return linear(h, p["fw3"], p["fb3"], relu=False)


# ----------------------- Params + pure-JAX reference ----------------------- #

def init_params(key, batch):
    ks = jax.random.split(key, 14)

    def nrm(k, shape, scale=0.1):
        return (scale * jax.random.normal(k, shape)).astype(jnp.float32)

    fc_in = batch * 64                      # mirrors 32000 = 500 * 64 in original
    return dict(
        w1=nrm(ks[0], (3, 1, 32)),   b1=nrm(ks[1], (1, 32)),
        w2=nrm(ks[2], (3, 32, 32)),  b2=nrm(ks[3], (1, 32)),
        w3=nrm(ks[4], (3, 32, 64)),  b3=nrm(ks[5], (1, 64)),
        w4=nrm(ks[6], (3, 64, 64)),  b4=nrm(ks[7], (1, 64)),
        fw1=nrm(ks[8], (fc_in, fc_in // 2)),       fb1=nrm(ks[9], (1, fc_in // 2)),
        fw2=nrm(ks[10], (fc_in // 2, fc_in // 4)), fb2=nrm(ks[11], (1, fc_in // 4)),
        fw3=nrm(ks[12], (fc_in // 4, 2001)),       fb3=nrm(ks[13], (1, 2001)),
    )


def ref_forward(x_ncl, p):
    def conv(x, w, b, pool):
        N, L, _ = x.shape
        xp = jnp.pad(x, ((0, 0), (1, 1), (0, 0)))
        y = (jnp.einsum("nlc,cd->nld", xp[:, 0:L], w[0])
             + jnp.einsum("nlc,cd->nld", xp[:, 1:L + 1], w[1])
             + jnp.einsum("nlc,cd->nld", xp[:, 2:L + 2], w[2]))
        y = jnp.maximum(y + b[None], 0.0)
        if pool:
            y = y.reshape(N, L // 2, 2, -1).max(axis=2)
        return y

    N = x_ncl.shape[0]
    y = jnp.transpose(x_ncl, (0, 2, 1))
    y = conv(y, p["w1"], p["b1"], False)
    y = conv(y, p["w2"], p["b2"], True)
    y = conv(y, p["w3"], p["b3"], False)
    y = conv(y, p["w4"], p["b4"], True)
    y_ncl = jnp.transpose(y, (0, 2, 1))
    flat = y_ncl.reshape(-1, N * y_ncl.shape[1])
    h = jnp.maximum(flat @ p["fw1"] + p["fb1"], 0.0)
    h = jnp.maximum(h @ p["fw2"] + p["fb2"], 0.0)
    return h @ p["fw3"] + p["fb3"]


# --------------------------------- Main ------------------------------------ #

if __name__ == "__main__":
    key = jax.random.PRNGKey(0)
    k_x, k_p = jax.random.split(key)

    N, L = 2, 16                                   # small config (see TODO above)
    x = jax.random.normal(k_x, (N, 1, L), dtype=jnp.float32)   # (N, C=1, L) NCL
    params = init_params(k_p, N)

    out = jax.jit(cnn_ae_forward)(x, params)
    out = jax.block_until_ready(out)

    assert out.shape == (L // 4, 2001), out.shape
    ref = ref_forward(x, params)
    if not bool(jnp.allclose(out, ref, atol=1e-4, rtol=1e-4)):
        raise AssertionError("Pallas output mismatch vs pure-JAX reference")
    print("KERNEL_OK")
</pallas_src>

<mosaic_0001>
module attributes {stable_mosaic.version = 11 : i64} {
  func.func @conv_stack_kernel(%arg0: i32, %arg1: memref<32x1xf32, #tpu.memory_space<vmem>>, %arg2: memref<3x32xf32, #tpu.memory_space<vmem>>, %arg3: memref<1x32xf32, #tpu.memory_space<vmem>>, %arg4: memref<96x32xf32, #tpu.memory_space<vmem>>, %arg5: memref<1x32xf32, #tpu.memory_space<vmem>>, %arg6: memref<96x64xf32, #tpu.memory_space<vmem>>, %arg7: memref<1x64xf32, #tpu.memory_space<vmem>>, %arg8: memref<192x64xf32, #tpu.memory_space<vmem>>, %arg9: memref<1x64xf32, #tpu.memory_space<vmem>>, %arg10: memref<8x64xf32, #tpu.memory_space<vmem>>) attributes {dimension_semantics = [#tpu.dimension_semantics<parallel>], iteration_bounds = array<i64: 1>, scalar_prefetch = 0 : i64, scratch_operands = 0 : i64, tpu.core_type = #tpu.core_type<tc>, window_params = [{transform_indices = @transform_0, window_bounds = array<i64: 32, 1>}, {pipeline_mode = #tpu.pipeline_mode<synchronous>, transform_indices = @transform_1, window_bounds = array<i64: 3, 32>}, {pipeline_mode = #tpu.pipeline_mode<synchronous>, transform_indices = @transform_2, window_bounds = array<i64: 1, 32>}, {pipeline_mode = #tpu.pipeline_mode<synchronous>, transform_indices = @transform_3, window_bounds = array<i64: 96, 32>}, {pipeline_mode = #tpu.pipeline_mode<synchronous>, transform_indices = @transform_4, window_bounds = array<i64: 1, 32>}, {pipeline_mode = #tpu.pipeline_mode<synchronous>, transform_indices = @transform_5, window_bounds = array<i64: 96, 64>}, {pipeline_mode = #tpu.pipeline_mode<synchronous>, transform_indices = @transform_6, window_bounds = array<i64: 1, 64>}, {pipeline_mode = #tpu.pipeline_mode<synchronous>, transform_indices = @transform_7, window_bounds = array<i64: 192, 64>}, {pipeline_mode = #tpu.pipeline_mode<synchronous>, transform_indices = @transform_8, window_bounds = array<i64: 1, 64>}, {transform_indices = @transform_9, window_bounds = array<i64: 8, 64>}]} {
    %c0 = arith.constant 0 : index
    %c0_0 = arith.constant 0 : index
    %0 = vector.load %arg1[%c0, %c0_0] : memref<32x1xf32, #tpu.memory_space<vmem>>, vector<32x1xf32>
    %c0_1 = arith.constant 0 : index
    %c0_2 = arith.constant 0 : index
    %1 = vector.load %arg2[%c0_1, %c0_2] : memref<3x32xf32, #tpu.memory_space<vmem>>, vector<3x32xf32>
    %cst = arith.constant 0.000000e+00 : f32
    %2 = vector.broadcast %cst : f32 to vector<1x1xf32>
    %3 = vector.extract_strided_slice %0 {offsets = [0, 0], sizes = [31, 1], strides = [1, 1]} : vector<32x1xf32> to vector<31x1xf32>
    %4 = tpu.concatenate %2, %3 in 0 : vector<1x1xf32>, vector<31x1xf32> -> vector<32x1xf32>
    %5 = vector.extract_strided_slice %0 {offsets = [1, 0], sizes = [31, 1], strides = [1, 1]} : vector<32x1xf32> to vector<31x1xf32>
    %6 = tpu.concatenate %5, %2 in 0 : vector<31x1xf32>, vector<1x1xf32> -> vector<32x1xf32>
    %7 = tpu.iota {dimensions = array<i32: 0>} : vector<32x1xi32>
    %c16_i32 = arith.constant 16 : i32
    %c0_i32 = arith.constant 0 : i32
    %8 = arith.cmpi eq, %c16_i32, %c0_i32 : i32
    %c1_i32 = arith.constant 1 : i32
    %9 = arith.select %8, %c1_i32, %c16_i32 : i32
    %10 = vector.broadcast %9 : i32 to vector<32x1xi32>
    %11 = arith.remsi %7, %10 : vector<32x1xi32>
    %c0_i32_3 = arith.constant 0 : i32
    %12 = vector.broadcast %c0_i32_3 : i32 to vector<32x1xi32>
    %13 = arith.cmpi ne, %11, %12 : vector<32x1xi32>
    %c0_i32_4 = arith.constant 0 : i32
    %14 = vector.broadcast %c0_i32_4 : i32 to vector<32x1xi32>
    %15 = arith.cmpi slt, %11, %14 : vector<32x1xi32>
    %c0_i32_5 = arith.constant 0 : i32
    %16 = arith.cmpi slt, %9, %c0_i32_5 : i32
    %17 = vector.broadcast %16 : i1 to vector<32x1xi1>
    %18 = vector.broadcast %17 : vector<32x1xi1> to vector<32x1xi1>
    %19 = arith.xori %15, %18 : vector<32x1xi1>
    %20 = arith.andi %19, %13 : vector<32x1xi1>
    %21 = vector.broadcast %9 : i32 to vector<32x1xi32>
    %22 = arith.addi %11, %21 : vector<32x1xi32>
    %23 = arith.select %20, %22, %11 : vector<32x1xi1>, vector<32x1xi32>
    %c0_i32_6 = arith.constant 0 : i32
    %24 = vector.broadcast %c0_i32_6 : i32 to vector<32x1xi32>
    %25 = arith.cmpi eq, %23, %24 : vector<32x1xi32>
    %cst_7 = arith.constant 0.000000e+00 : f32
    %26 = vector.broadcast %cst_7 : f32 to vector<32x1xf32>
    %27 = arith.select %25, %26, %4 : vector<32x1xi1>, vector<32x1xf32>
    %c15_i32 = arith.constant 15 : i32
    %28 = vector.broadcast %c15_i32 : i32 to vector<32x1xi32>
    %29 = arith.cmpi eq, %23, %28 : vector<32x1xi32>
    %cst_8 = arith.constant 0.000000e+00 : f32
    %30 = vector.broadcast %cst_8 : f32 to vector<32x1xf32>
    %31 = arith.select %29, %30, %6 : vector<32x1xi1>, vector<32x1xf32>
    %32 = vector.extract_strided_slice %1 {offsets = [0, 0], sizes = [1, 32], strides = [1, 1]} : vector<3x32xf32> to vector<1x32xf32>
    %33 = vector.shape_cast %32 : vector<1x32xf32> to vector<32xf32>
    %34 = vector.shape_cast %33 : vector<32xf32> to vector<1x32xf32>
    %35 = vector.broadcast %27 : vector<32x1xf32> to vector<32x32xf32>
    %36 = vector.broadcast %34 : vector<1x32xf32> to vector<32x32xf32>
    %37 = arith.mulf %35, %36 : vector<32x32xf32>
    %38 = vector.extract_strided_slice %1 {offsets = [1, 0], sizes = [1, 32], strides = [1, 1]} : vector<3x32xf32> to vector<1x32xf32>
    %39 = vector.shape_cast %38 : vector<1x32xf32> to vector<32xf32>
    %40 = vector.shape_cast %39 : vector<32xf32> to vector<1x32xf32>
    %41 = vector.broadcast %0 : vector<32x1xf32> to vector<32x32xf32>
    %42 = vector.broadcast %40 : vector<1x32xf32> to vector<32x32xf32>
    %43 = arith.mulf %41, %42 : vector<32x32xf32>
    %44 = arith.addf %37, %43 : vector<32x32xf32>
    %45 = vector.extract_strided_slice %1 {offsets = [2, 0], sizes = [1, 32], strides = [1, 1]} : vector<3x32xf32> to vector<1x32xf32>
    %46 = vector.shape_cast %45 : vector<1x32xf32> to vector<32xf32>
    %47 = vector.shape_cast %46 : vector<32xf32> to vector<1x32xf32>
    %48 = vector.broadcast %31 : vector<32x1xf32> to vector<32x32xf32>
    %49 = vector.broadcast %47 : vector<1x32xf32> to vector<32x32xf32>
    %50 = arith.mulf %48, %49 : vector<32x32xf32>
    %51 = arith.addf %44, %50 : vector<32x32xf32>
    %c0_9 = arith.constant 0 : index
    %c0_10 = arith.constant 0 : index
    %52 = vector.load %arg3[%c0_9, %c0_10] : memref<1x32xf32, #tpu.memory_space<vmem>>, vector<1x32xf32>
    %53 = vector.broadcast %52 : vector<1x32xf32> to vector<32x32xf32>
    %54 = arith.addf %51, %53 : vector<32x32xf32>
    %cst_11 = arith.constant 0.000000e+00 : f32
    %55 = vector.broadcast %cst_11 : f32 to vector<32x32xf32>
    %56 = arith.maximumf %54, %55 : vector<32x32xf32>
    %c0_12 = arith.constant 0 : index
    %c0_13 = arith.constant 0 : index
    %57 = vector.load %arg4[%c0_12, %c0_13] : memref<96x32xf32, #tpu.memory_space<vmem>>, vector<96x32xf32>
    %c0_14 = arith.constant 0 : index
    %c0_15 = arith.constant 0 : index
    %58 = vector.load %arg5[%c0_14, %c0_15] : memref<1x32xf32, #tpu.memory_space<vmem>>, vector<1x32xf32>
    %cst_16 = arith.constant 0.000000e+00 : f32
    %59 = vector.broadcast %cst_16 : f32 to vector<1x32xf32>
    %60 = vector.extract_strided_slice %56 {offsets = [0, 0], sizes = [31, 32], strides = [1, 1]} : vector<32x32xf32> to vector<31x32xf32>
    %61 = tpu.concatenate %59, %60 in 0 : vector<1x32xf32>, vector<31x32xf32> -> vector<32x32xf32>
    %62 = vector.extract_strided_slice %56 {offsets = [1, 0], sizes = [31, 32], strides = [1, 1]} : vector<32x32xf32> to vector<31x32xf32>
    %63 = tpu.concatenate %62, %59 in 0 : vector<31x32xf32>, vector<1x32xf32> -> vector<32x32xf32>
    %64 = tpu.iota {dimensions = array<i32: 0>} : vector<32x1xi32>
    %c16_i32_17 = arith.constant 16 : i32
    %c0_i32_18 = arith.constant 0 : i32
    %65 = arith.cmpi eq, %c16_i32_17, %c0_i32_18 : i32
    %c1_i32_19 = arith.constant 1 : i32
    %66 = arith.select %65, %c1_i32_19, %c16_i32_17 : i32
    %67 = vector.broadcast %66 : i32 to vector<32x1xi32>
    %68 = arith.remsi %64, %67 : vector<32x1xi32>
    %c0_i32_20 = arith.constant 0 : i32
    %69 = vector.broadcast %c0_i32_20 : i32 to vector<32x1xi32>
    %70 = arith.cmpi ne, %68, %69 : vector<32x1xi32>
    %c0_i32_21 = arith.constant 0 : i32
    %71 = vector.broadcast %c0_i32_21 : i32 to vector<32x1xi32>
    %72 = arith.cmpi slt, %68, %71 : vector<32x1xi32>
    %c0_i32_22 = arith.constant 0 : i32
    %73 = arith.cmpi slt, %66, %c0_i32_22 : i32
    %74 = vector.broadcast %73 : i1 to vector<32x1xi1>
    %75 = vector.broadcast %74 : vector<32x1xi1> to vector<32x1xi1>
    %76 = arith.xori %72, %75 : vector<32x1xi1>
    %77 = arith.andi %76, %70 : vector<32x1xi1>
    %78 = vector.broadcast %66 : i32 to vector<32x1xi32>
    %79 = arith.addi %68, %78 : vector<32x1xi32>
    %80 = arith.select %77, %79, %68 : vector<32x1xi1>, vector<32x1xi32>
    %c0_i32_23 = arith.constant 0 : i32
    %81 = vector.broadcast %c0_i32_23 : i32 to vector<32x1xi32>
    %82 = arith.cmpi eq, %80, %81 : vector<32x1xi32>
    %cst_24 = arith.constant 0.000000e+00 : f32
    %83 = vector.shape_cast %82 : vector<32x1xi1> to vector<32x1xi1>
    %84 = vector.broadcast %83 : vector<32x1xi1> to vector<32x32xi1>
    %85 = vector.broadcast %cst_24 : f32 to vector<32x32xf32>
    %86 = arith.select %84, %85, %61 : vector<32x32xi1>, vector<32x32xf32>
    %c15_i32_25 = arith.constant 15 : i32
    %87 = vector.broadcast %c15_i32_25 : i32 to vector<32x1xi32>
    %88 = arith.cmpi eq, %80, %87 : vector<32x1xi32>
    %cst_26 = arith.constant 0.000000e+00 : f32
    %89 = vector.shape_cast %88 : vector<32x1xi1> to vector<32x1xi1>
    %90 = vector.broadcast %89 : vector<32x1xi1> to vector<32x32xi1>
    %91 = vector.broadcast %cst_26 : f32 to vector<32x32xf32>
    %92 = arith.select %90, %91, %63 : vector<32x32xi1>, vector<32x32xf32>
    %93 = tpu.concatenate %86, %56, %92 in 1 : vector<32x32xf32>, vector<32x32xf32>, vector<32x32xf32> -> vector<32x96xf32>
    %cst_27 = arith.constant dense<0.000000e+00> : vector<32x32xf32>
    %94 = tpu.matmul %93, %57, %cst_27 {dimension_numbers = #tpu.dot_dimension_numbers<[1], [0], [0], [1], [0, 0, 1, 1], [], []>} : vector<32x96xf32>, vector<96x32xf32>, vector<32x32xf32> -> vector<32x32xf32>
    %95 = vector.broadcast %58 : vector<1x32xf32> to vector<32x32xf32>
    %96 = arith.addf %94, %95 : vector<32x32xf32>
    %cst_28 = arith.constant 0.000000e+00 : f32
    %97 = vector.broadcast %cst_28 : f32 to vector<32x32xf32>
    %98 = arith.maximumf %96, %97 : vector<32x32xf32>
    %99 = vector.shape_cast %98 : vector<32x32xf32> to vector<16x2x32xf32>
    %cst_29 = arith.constant dense<0xFF800000> : vector<16x32xf32>
    %100 = vector.multi_reduction <maximumf>, %99, %cst_29 [1] : vector<16x2x32xf32> to vector<16x32xf32>
    %c0_30 = arith.constant 0 : index
    %c0_31 = arith.constant 0 : index
    %101 = vector.load %arg6[%c0_30, %c0_31] : memref<96x64xf32, #tpu.memory_space<vmem>>, vector<96x64xf32>
    %c0_32 = arith.constant 0 : index
    %c0_33 = arith.constant 0 : index
    %102 = vector.load %arg7[%c0_32, %c0_33] : memref<1x64xf32, #tpu.memory_space<vmem>>, vector<1x64xf32>
    %cst_34 = arith.constant 0.000000e+00 : f32
    %103 = vector.broadcast %cst_34 : f32 to vector<1x32xf32>
    %104 = vector.extract_strided_slice %100 {offsets = [0, 0], sizes = [15, 32], strides = [1, 1]} : vector<16x32xf32> to vector<15x32xf32>
    %105 = tpu.concatenate %103, %104 in 0 : vector<1x32xf32>, vector<15x32xf32> -> vector<16x32xf32>
    %106 = vector.extract_strided_slice %100 {offsets = [1, 0], sizes = [15, 32], strides = [1, 1]} : vector<16x32xf32> to vector<15x32xf32>
    %107 = tpu.concatenate %106, %103 in 0 : vector<15x32xf32>, vector<1x32xf32> -> vector<16x32xf32>
    %108 = tpu.iota {dimensions = array<i32: 0>} : vector<16x1xi32>
    %c8_i32 = arith.constant 8 : i32
    %c0_i32_35 = arith.constant 0 : i32
    %109 = arith.cmpi eq, %c8_i32, %c0_i32_35 : i32
    %c1_i32_36 = arith.constant 1 : i32
    %110 = arith.select %109, %c1_i32_36, %c8_i32 : i32
    %111 = vector.broadcast %110 : i32 to vector<16x1xi32>
    %112 = arith.remsi %108, %111 : vector<16x1xi32>
    %c0_i32_37 = arith.constant 0 : i32
    %113 = vector.broadcast %c0_i32_37 : i32 to vector<16x1xi32>
    %114 = arith.cmpi ne, %112, %113 : vector<16x1xi32>
    %c0_i32_38 = arith.constant 0 : i32
    %115 = vector.broadcast %c0_i32_38 : i32 to vector<16x1xi32>
    %116 = arith.cmpi slt, %112, %115 : vector<16x1xi32>
    %c0_i32_39 = arith.constant 0 : i32
    %117 = arith.cmpi slt, %110, %c0_i32_39 : i32
    %118 = vector.broadcast %117 : i1 to vector<16x1xi1>
    %119 = vector.broadcast %118 : vector<16x1xi1> to vector<16x1xi1>
    %120 = arith.xori %116, %119 : vector<16x1xi1>
    %121 = arith.andi %120, %114 : vector<16x1xi1>
    %122 = vector.broadcast %110 : i32 to vector<16x1xi32>
    %123 = arith.addi %112, %122 : vector<16x1xi32>
    %124 = arith.select %121, %123, %112 : vector<16x1xi1>, vector<16x1xi32>
    %c0_i32_40 = arith.constant 0 : i32
    %125 = vector.broadcast %c0_i32_40 : i32 to vector<16x1xi32>
    %126 = arith.cmpi eq, %124, %125 : vector<16x1xi32>
    %cst_41 = arith.constant 0.000000e+00 : f32
    %127 = vector.shape_cast %126 : vector<16x1xi1> to vector<16x1xi1>
    %128 = vector.broadcast %127 : vector<16x1xi1> to vector<16x32xi1>
    %129 = vector.broadcast %cst_41 : f32 to vector<16x32xf32>
    %130 = arith.select %128, %129, %105 : vector<16x32xi1>, vector<16x32xf32>
    %c7_i32 = arith.constant 7 : i32
    %131 = vector.broadcast %c7_i32 : i32 to vector<16x1xi32>
    %132 = arith.cmpi eq, %124, %131 : vector<16x1xi32>
    %cst_42 = arith.constant 0.000000e+00 : f32
    %133 = vector.shape_cast %132 : vector<16x1xi1> to vector<16x1xi1>
    %134 = vector.broadcast %133 : vector<16x1xi1> to vector<16x32xi1>
    %135 = vector.broadcast %cst_42 : f32 to vector<16x32xf32>
    %136 = arith.select %134, %135, %107 : vector<16x32xi1>, vector<16x32xf32>
    %137 = tpu.concatenate %130, %100, %136 in 1 : vector<16x32xf32>, vector<16x32xf32>, vector<16x32xf32> -> vector<16x96xf32>
    %cst_43 = arith.constant dense<0.000000e+00> : vector<16x64xf32>
    %138 = tpu.matmul %137, %101, %cst_43 {dimension_numbers = #tpu.dot_dimension_numbers<[1], [0], [0], [1], [0, 0, 1, 1], [], []>} : vector<16x96xf32>, vector<96x64xf32>, vector<16x64xf32> -> vector<16x64xf32>
    %139 = vector.broadcast %102 : vector<1x64xf32> to vector<16x64xf32>
    %140 = arith.addf %138, %139 : vector<16x64xf32>
    %cst_44 = arith.constant 0.000000e+00 : f32
    %141 = vector.broadcast %cst_44 : f32 to vector<16x64xf32>
    %142 = arith.maximumf %140, %141 : vector<16x64xf32>
    %c0_45 = arith.constant 0 : index
    %c0_46 = arith.constant 0 : index
    %143 = vector.load %arg8[%c0_45, %c0_46] : memref<192x64xf32, #tpu.memory_space<vmem>>, vector<192x64xf32>
    %c0_47 = arith.constant 0 : index
    %c0_48 = arith.constant 0 : index
    %144 = vector.load %arg9[%c0_47, %c0_48] : memref<1x64xf32, #tpu.memory_space<vmem>>, vector<1x64xf32>
    %cst_49 = arith.constant 0.000000e+00 : f32
    %145 = vector.broadcast %cst_49 : f32 to vector<1x64xf32>
    %146 = vector.extract_strided_slice %142 {offsets = [0, 0], sizes = [15, 64], strides = [1, 1]} : vector<16x64xf32> to vector<15x64xf32>
    %147 = tpu.concatenate %145, %146 in 0 : vector<1x64xf32>, vector<15x64xf32> -> vector<16x64xf32>
    %148 = vector.extract_strided_slice %142 {offsets = [1, 0], sizes = [15, 64], strides = [1, 1]} : vector<16x64xf32> to vector<15x64xf32>
    %149 = tpu.concatenate %148, %145 in 0 : vector<15x64xf32>, vector<1x64xf32> -> vector<16x64xf32>
    %150 = tpu.iota {dimensions = array<i32: 0>} : vector<16x1xi32>
    %c8_i32_50 = arith.constant 8 : i32
    %c0_i32_51 = arith.constant 0 : i32
    %151 = arith.cmpi eq, %c8_i32_50, %c0_i32_51 : i32
    %c1_i32_52 = arith.constant 1 : i32
    %152 = arith.select %151, %c1_i32_52, %c8_i32_50 : i32
    %153 = vector.broadcast %152 : i32 to vector<16x1xi32>
    %154 = arith.remsi %150, %153 : vector<16x1xi32>
    %c0_i32_53 = arith.constant 0 : i32
    %155 = vector.broadcast %c0_i32_53 : i32 to vector<16x1xi32>
    %156 = arith.cmpi ne, %154, %155 : vector<16x1xi32>
    %c0_i32_54 = arith.constant 0 : i32
    %157 = vector.broadcast %c0_i32_54 : i32 to vector<16x1xi32>
    %158 = arith.cmpi slt, %154, %157 : vector<16x1xi32>
    %c0_i32_55 = arith.constant 0 : i32
    %159 = arith.cmpi slt, %152, %c0_i32_55 : i32
    %160 = vector.broadcast %159 : i1 to vector<16x1xi1>
    %161 = vector.broadcast %160 : vector<16x1xi1> to vector<16x1xi1>
    %162 = arith.xori %158, %161 : vector<16x1xi1>
    %163 = arith.andi %162, %156 : vector<16x1xi1>
    %164 = vector.broadcast %152 : i32 to vector<16x1xi32>
    %165 = arith.addi %154, %164 : vector<16x1xi32>
    %166 = arith.select %163, %165, %154 : vector<16x1xi1>, vector<16x1xi32>
    %c0_i32_56 = arith.constant 0 : i32
    %167 = vector.broadcast %c0_i32_56 : i32 to vector<16x1xi32>
    %168 = arith.cmpi eq, %166, %167 : vector<16x1xi32>
    %cst_57 = arith.constant 0.000000e+00 : f32
    %169 = vector.shape_cast %168 : vector<16x1xi1> to vector<16x1xi1>
    %170 = vector.broadcast %169 : vector<16x1xi1> to vector<16x64xi1>
    %171 = vector.broadcast %cst_57 : f32 to vector<16x64xf32>
    %172 = arith.select %170, %171, %147 : vector<16x64xi1>, vector<16x64xf32>
    %c7_i32_58 = arith.constant 7 : i32
    %173 = vector.broadcast %c7_i32_58 : i32 to vector<16x1xi32>
    %174 = arith.cmpi eq, %166, %173 : vector<16x1xi32>
    %cst_59 = arith.constant 0.000000e+00 : f32
    %175 = vector.shape_cast %174 : vector<16x1xi1> to vector<16x1xi1>
    %176 = vector.broadcast %175 : vector<16x1xi1> to vector<16x64xi1>
    %177 = vector.broadcast %cst_59 : f32 to vector<16x64xf32>
    %178 = arith.select %176, %177, %149 : vector<16x64xi1>, vector<16x64xf32>
    %179 = tpu.concatenate %172, %142, %178 in 1 : vector<16x64xf32>, vector<16x64xf32>, vector<16x64xf32> -> vector<16x192xf32>
    %cst_60 = arith.constant dense<0.000000e+00> : vector<16x64xf32>
    %180 = tpu.matmul %179, %143, %cst_60 {dimension_numbers = #tpu.dot_dimension_numbers<[1], [0], [0], [1], [0, 0, 1, 1], [], []>} : vector<16x192xf32>, vector<192x64xf32>, vector<16x64xf32> -> vector<16x64xf32>
    %181 = vector.broadcast %144 : vector<1x64xf32> to vector<16x64xf32>
    %182 = arith.addf %180, %181 : vector<16x64xf32>
    %cst_61 = arith.constant 0.000000e+00 : f32
    %183 = vector.broadcast %cst_61 : f32 to vector<16x64xf32>
    %184 = arith.maximumf %182, %183 : vector<16x64xf32>
    %185 = vector.shape_cast %184 : vector<16x64xf32> to vector<8x2x64xf32>
    %cst_62 = arith.constant dense<0xFF800000> : vector<8x64xf32>
    %186 = vector.multi_reduction <maximumf>, %185, %cst_62 [1] : vector<8x2x64xf32> to vector<8x64xf32>
    %c0_63 = arith.constant 0 : index
    %c0_64 = arith.constant 0 : index
    %187 = vector.load %arg10[%c0_63, %c0_64] : memref<8x64xf32, #tpu.memory_space<vmem>>, vector<8x64xf32>
    tpu.vector_store %arg10[%c0_63, %c0_64], %186 {strides = array<i32>} : memref<8x64xf32, #tpu.memory_space<vmem>>, vector<8x64xf32>,
    return
  }
  func.func @transform_0(%arg0: i32) -> (i32, i32) {
    %c0_i32 = arith.constant 0 : i32
    %c0_i32_0 = arith.constant 0 : i32
    return %arg0, %c0_i32 : i32, i32
  }
  func.func @transform_1(%arg0: i32) -> (i32, i32) {
    %c0_i32 = arith.constant 0 : i32
    %c0_i32_0 = arith.constant 0 : i32
    %c0_i32_1 = arith.constant 0 : i32
    return %c0_i32, %c0_i32_0 : i32, i32
  }
  func.func @transform_2(%arg0: i32) -> (i32, i32) {
    %c0_i32 = arith.constant 0 : i32
    %c0_i32_0 = arith.constant 0 : i32
    %c0_i32_1 = arith.constant 0 : i32
    return %c0_i32, %c0_i32_0 : i32, i32
  }
  func.func @transform_3(%arg0: i32) -> (i32, i32) {
    %c0_i32 = arith.constant 0 : i32
    %c0_i32_0 = arith.constant 0 : i32
    %c0_i32_1 = arith.constant 0 : i32
    return %c0_i32, %c0_i32_0 : i32, i32
  }
  func.func @transform_4(%arg0: i32) -> (i32, i32) {
    %c0_i32 = arith.constant 0 : i32
    %c0_i32_0 = arith.constant 0 : i32
    %c0_i32_1 = arith.constant 0 : i32
    return %c0_i32, %c0_i32_0 : i32, i32
  }
  func.func @transform_5(%arg0: i32) -> (i32, i32) {
    %c0_i32 = arith.constant 0 : i32
    %c0_i32_0 = arith.constant 0 : i32
    %c0_i32_1 = arith.constant 0 : i32
    return %c0_i32, %c0_i32_0 : i32, i32
  }
  func.func @transform_6(%arg0: i32) -> (i32, i32) {
    %c0_i32 = arith.constant 0 : i32
    %c0_i32_0 = arith.constant 0 : i32
    %c0_i32_1 = arith.constant 0 : i32
    return %c0_i32, %c0_i32_0 : i32, i32
  }
  func.func @transform_7(%arg0: i32) -> (i32, i32) {
    %c0_i32 = arith.constant 0 : i32
    %c0_i32_0 = arith.constant 0 : i32
    %c0_i32_1 = arith.constant 0 : i32
    return %c0_i32, %c0_i32_0 : i32, i32
  }
  func.func @transform_8(%arg0: i32) -> (i32, i32) {
    %c0_i32 = arith.constant 0 : i32
    %c0_i32_0 = arith.constant 0 : i32
    %c0_i32_1 = arith.constant 0 : i32
    return %c0_i32, %c0_i32_0 : i32, i32
  }
  func.func @transform_9(%arg0: i32) -> (i32, i32) {
    %c0_i32 = arith.constant 0 : i32
    %c0_i32_0 = arith.constant 0 : i32
    return %arg0, %c0_i32 : i32, i32
  }
}

module attributes {stable_mosaic.version = 11 : i64} {
  func.func @linear_kernel(%arg0: i32, %arg1: i32, %arg2: memref<4x128xf32, #tpu.memory_space<vmem>>, %arg3: memref<128x64xf32, #tpu.memory_space<vmem>>, %arg4: memref<1x64xf32, #tpu.memory_space<vmem>>, %arg5: memref<4x64xf32, #tpu.memory_space<vmem>>, %arg6: memref<4x64xf32, #tpu.memory_space<vmem>>) attributes {dimension_semantics = [#tpu.dimension_semantics<parallel>, #tpu.dimension_semantics<arbitrary>], iteration_bounds = array<i64: 1, 1>, scalar_prefetch = 0 : i64, scratch_operands = 1 : i64, tpu.core_type = #tpu.core_type<tc>, window_params = [{transform_indices = @transform_0, window_bounds = array<i64: 4, 128>}, {transform_indices = @transform_1, window_bounds = array<i64: 128, 64>}, {transform_indices = @transform_2, window_bounds = array<i64: 1, 64>}, {transform_indices = @transform_3, window_bounds = array<i64: 4, 64>}]} {
    %c0_i32 = arith.constant 0 : i32
    %0 = arith.cmpi eq, %arg1, %c0_i32 : i32
    %1 = arith.extui %0 : i1 to i32
    %c0_i32_0 = arith.constant 0 : i32
    %2 = arith.cmpi ne, %1, %c0_i32_0 : i32
    scf.if %2 {
      %cst_10 = arith.constant 0.000000e+00 : f32
      %12 = vector.broadcast %cst_10 : f32 to vector<4x64xf32>
      %c0_11 = arith.constant 0 : index
      %c0_12 = arith.constant 0 : index
      %13 = vector.load %arg6[%c0_11, %c0_12] : memref<4x64xf32, #tpu.memory_space<vmem>>, vector<4x64xf32>
      tpu.vector_store %arg6[%c0_11, %c0_12], %12 {strides = array<i32>} : memref<4x64xf32, #tpu.memory_space<vmem>>, vector<4x64xf32>,
    } else {
    }
    %c0 = arith.constant 0 : index
    %c0_1 = arith.constant 0 : index
    %3 = vector.load %arg6[%c0, %c0_1] : memref<4x64xf32, #tpu.memory_space<vmem>>, vector<4x64xf32>
    %c0_2 = arith.constant 0 : index
    %c0_3 = arith.constant 0 : index
    %4 = vector.load %arg2[%c0_2, %c0_3] : memref<4x128xf32, #tpu.memory_space<vmem>>, vector<4x128xf32>
    %c0_4 = arith.constant 0 : index
    %c0_5 = arith.constant 0 : index
    %5 = vector.load %arg3[%c0_4, %c0_5] : memref<128x64xf32, #tpu.memory_space<vmem>>, vector<128x64xf32>
    %cst = arith.constant dense<0.000000e+00> : vector<4x64xf32>
    %6 = tpu.matmul %4, %5, %cst {dimension_numbers = #tpu.dot_dimension_numbers<[1], [0], [0], [1], [0, 0, 1, 1], [], []>} : vector<4x128xf32>, vector<128x64xf32>, vector<4x64xf32> -> vector<4x64xf32>
    %7 = arith.addf %3, %6 : vector<4x64xf32>
    %c0_6 = arith.constant 0 : index
    %c0_7 = arith.constant 0 : index
    %8 = vector.load %arg6[%c0_6, %c0_7] : memref<4x64xf32, #tpu.memory_space<vmem>>, vector<4x64xf32>
    tpu.vector_store %arg6[%c0_6, %c0_7], %7 {strides = array<i32>} : memref<4x64xf32, #tpu.memory_space<vmem>>, vector<4x64xf32>,
    %c0_i32_8 = arith.constant 0 : i32
    %9 = arith.cmpi eq, %arg1, %c0_i32_8 : i32
    %10 = arith.extui %9 : i1 to i32
    %c0_i32_9 = arith.constant 0 : i32
    %11 = arith.cmpi ne, %10, %c0_i32_9 : i32
    scf.if %11 {
      %c0_10 = arith.constant 0 : index
      %c0_11 = arith.constant 0 : index
      %12 = vector.load %arg6[%c0_10, %c0_11] : memref<4x64xf32, #tpu.memory_space<vmem>>, vector<4x64xf32>
      %c0_12 = arith.constant 0 : index
      %c0_13 = arith.constant 0 : index
      %13 = vector.load %arg4[%c0_12, %c0_13] : memref<1x64xf32, #tpu.memory_space<vmem>>, vector<1x64xf32>
      %14 = vector.broadcast %13 : vector<1x64xf32> to vector<4x64xf32>
      %15 = arith.addf %12, %14 : vector<4x64xf32>
      %cst_14 = arith.constant 0.000000e+00 : f32
      %16 = vector.broadcast %cst_14 : f32 to vector<4x64xf32>
      %17 = arith.maximumf %15, %16 : vector<4x64xf32>
      %c0_15 = arith.constant 0 : index
      %c0_16 = arith.constant 0 : index
      %18 = vector.load %arg5[%c0_15, %c0_16] : memref<4x64xf32, #tpu.memory_space<vmem>>, vector<4x64xf32>
      tpu.vector_store %arg5[%c0_15, %c0_16], %17 {strides = array<i32>} : memref<4x64xf32, #tpu.memory_space<vmem>>, vector<4x64xf32>,
    } else {
    }
    return
  }
  func.func @transform_0(%arg0: i32, %arg1: i32) -> (i32, i32) {
    %c0_i32 = arith.constant 0 : i32
    %c0_i32_0 = arith.constant 0 : i32
    return %c0_i32, %arg1 : i32, i32
  }
  func.func @transform_1(%arg0: i32, %arg1: i32) -> (i32, i32) {
    %c0_i32 = arith.constant 0 : i32
    return %arg1, %arg0 : i32, i32
  }
  func.func @transform_2(%arg0: i32, %arg1: i32) -> (i32, i32) {
    %c0_i32 = arith.constant 0 : i32
    %c0_i32_0 = arith.constant 0 : i32
    return %c0_i32, %arg0 : i32, i32
  }
  func.func @transform_3(%arg0: i32, %arg1: i32) -> (i32, i32) {
    %c0_i32 = arith.constant 0 : i32
    %c0_i32_0 = arith.constant 0 : i32
    return %c0_i32, %arg0 : i32, i32
  }
}

module attributes {stable_mosaic.version = 11 : i64} {
  func.func @linear_kernel(%arg0: i32, %arg1: i32, %arg2: memref<4x64xf32, #tpu.memory_space<vmem>>, %arg3: memref<64x32xf32, #tpu.memory_space<vmem>>, %arg4: memref<1x32xf32, #tpu.memory_space<vmem>>, %arg5: memref<4x32xf32, #tpu.memory_space<vmem>>, %arg6: memref<4x32xf32, #tpu.memory_space<vmem>>) attributes {dimension_semantics = [#tpu.dimension_semantics<parallel>, #tpu.dimension_semantics<arbitrary>], iteration_bounds = array<i64: 1, 1>, scalar_prefetch = 0 : i64, scratch_operands = 1 : i64, tpu.core_type = #tpu.core_type<tc>, window_params = [{transform_indices = @transform_0, window_bounds = array<i64: 4, 64>}, {transform_indices = @transform_1, window_bounds = array<i64: 64, 32>}, {transform_indices = @transform_2, window_bounds = array<i64: 1, 32>}, {transform_indices = @transform_3, window_bounds = array<i64: 4, 32>}]} {
    %c0_i32 = arith.constant 0 : i32
    %0 = arith.cmpi eq, %arg1, %c0_i32 : i32
    %1 = arith.extui %0 : i1 to i32
    %c0_i32_0 = arith.constant 0 : i32
    %2 = arith.cmpi ne, %1, %c0_i32_0 : i32
    scf.if %2 {
      %cst_10 = arith.constant 0.000000e+00 : f32
      %12 = vector.broadcast %cst_10 : f32 to vector<4x32xf32>
      %c0_11 = arith.constant 0 : index
      %c0_12 = arith.constant 0 : index
      %13 = vector.load %arg6[%c0_11, %c0_12] : memref<4x32xf32, #tpu.memory_space<vmem>>, vector<4x32xf32>
      tpu.vector_store %arg6[%c0_11, %c0_12], %12 {strides = array<i32>} : memref<4x32xf32, #tpu.memory_space<vmem>>, vector<4x32xf32>,
    } else {
    }
    %c0 = arith.constant 0 : index
    %c0_1 = arith.constant 0 : index
    %3 = vector.load %arg6[%c0, %c0_1] : memref<4x32xf32, #tpu.memory_space<vmem>>, vector<4x32xf32>
    %c0_2 = arith.constant 0 : index
    %c0_3 = arith.constant 0 : index
    %4 = vector.load %arg2[%c0_2, %c0_3] : memref<4x64xf32, #tpu.memory_space<vmem>>, vector<4x64xf32>
    %c0_4 = arith.constant 0 : index
    %c0_5 = arith.constant 0 : index
    %5 = vector.load %arg3[%c0_4, %c0_5] : memref<64x32xf32, #tpu.memory_space<vmem>>, vector<64x32xf32>
    %cst = arith.constant dense<0.000000e+00> : vector<4x32xf32>
    %6 = tpu.matmul %4, %5, %cst {dimension_numbers = #tpu.dot_dimension_numbers<[1], [0], [0], [1], [0, 0, 1, 1], [], []>} : vector<4x64xf32>, vector<64x32xf32>, vector<4x32xf32> -> vector<4x32xf32>
    %7 = arith.addf %3, %6 : vector<4x32xf32>
    %c0_6 = arith.constant 0 : index
    %c0_7 = arith.constant 0 : index
    %8 = vector.load %arg6[%c0_6, %c0_7] : memref<4x32xf32, #tpu.memory_space<vmem>>, vector<4x32xf32>
    tpu.vector_store %arg6[%c0_6, %c0_7], %7 {strides = array<i32>} : memref<4x32xf32, #tpu.memory_space<vmem>>, vector<4x32xf32>,
    %c0_i32_8 = arith.constant 0 : i32
    %9 = arith.cmpi eq, %arg1, %c0_i32_8 : i32
    %10 = arith.extui %9 : i1 to i32
    %c0_i32_9 = arith.constant 0 : i32
    %11 = arith.cmpi ne, %10, %c0_i32_9 : i32
    scf.if %11 {
      %c0_10 = arith.constant 0 : index
      %c0_11 = arith.constant 0 : index
      %12 = vector.load %arg6[%c0_10, %c0_11] : memref<4x32xf32, #tpu.memory_space<vmem>>, vector<4x32xf32>
      %c0_12 = arith.constant 0 : index
      %c0_13 = arith.constant 0 : index
      %13 = vector.load %arg4[%c0_12, %c0_13] : memref<1x32xf32, #tpu.memory_space<vmem>>, vector<1x32xf32>
      %14 = vector.broadcast %13 : vector<1x32xf32> to vector<4x32xf32>
      %15 = arith.addf %12, %14 : vector<4x32xf32>
      %cst_14 = arith.constant 0.000000e+00 : f32
      %16 = vector.broadcast %cst_14 : f32 to vector<4x32xf32>
      %17 = arith.maximumf %15, %16 : vector<4x32xf32>
      %c0_15 = arith.constant 0 : index
      %c0_16 = arith.constant 0 : index
      %18 = vector.load %arg5[%c0_15, %c0_16] : memref<4x32xf32, #tpu.memory_space<vmem>>, vector<4x32xf32>
      tpu.vector_store %arg5[%c0_15, %c0_16], %17 {strides = array<i32>} : memref<4x32xf32, #tpu.memory_space<vmem>>, vector<4x32xf32>,
    } else {
    }
    return
  }
  func.func @transform_0(%arg0: i32, %arg1: i32) -> (i32, i32) {
    %c0_i32 = arith.constant 0 : i32
    %c0_i32_0 = arith.constant 0 : i32
    return %c0_i32, %arg1 : i32, i32
  }
  func.func @transform_1(%arg0: i32, %arg1: i32) -> (i32, i32) {
    %c0_i32 = arith.constant 0 : i32
    return %arg1, %arg0 : i32, i32
  }
  func.func @transform_2(%arg0: i32, %arg1: i32) -> (i32, i32) {
    %c0_i32 = arith.constant 0 : i32
    %c0_i32_0 = arith.constant 0 : i32
    return %c0_i32, %arg0 : i32, i32
  }
  func.func @transform_3(%arg0: i32, %arg1: i32) -> (i32, i32) {
    %c0_i32 = arith.constant 0 : i32
    %c0_i32_0 = arith.constant 0 : i32
    return %c0_i32, %arg0 : i32, i32
  }
}

module attributes {stable_mosaic.version = 11 : i64} {
  func.func @linear_kernel(%arg0: i32, %arg1: i32, %arg2: memref<4x32xf32, #tpu.memory_space<vmem>>, %arg3: memref<32x2001xf32, #tpu.memory_space<vmem>>, %arg4: memref<1x2001xf32, #tpu.memory_space<vmem>>, %arg5: memref<4x2001xf32, #tpu.memory_space<vmem>>, %arg6: memref<4x2001xf32, #tpu.memory_space<vmem>>) attributes {dimension_semantics = [#tpu.dimension_semantics<parallel>, #tpu.dimension_semantics<arbitrary>], iteration_bounds = array<i64: 1, 1>, scalar_prefetch = 0 : i64, scratch_operands = 1 : i64, tpu.core_type = #tpu.core_type<tc>, window_params = [{transform_indices = @transform_0, window_bounds = array<i64: 4, 32>}, {transform_indices = @transform_1, window_bounds = array<i64: 32, 2001>}, {transform_indices = @transform_2, window_bounds = array<i64: 1, 2001>}, {transform_indices = @transform_3, window_bounds = array<i64: 4, 2001>}]} {
    %c0_i32 = arith.constant 0 : i32
    %0 = arith.cmpi eq, %arg1, %c0_i32 : i32
    %1 = arith.extui %0 : i1 to i32
    %c0_i32_0 = arith.constant 0 : i32
    %2 = arith.cmpi ne, %1, %c0_i32_0 : i32
    scf.if %2 {
      %cst_10 = arith.constant 0.000000e+00 : f32
      %12 = vector.broadcast %cst_10 : f32 to vector<4x2001xf32>
      %c0_11 = arith.constant 0 : index
      %c0_12 = arith.constant 0 : index
      %13 = vector.load %arg6[%c0_11, %c0_12] : memref<4x2001xf32, #tpu.memory_space<vmem>>, vector<4x2001xf32>
      tpu.vector_store %arg6[%c0_11, %c0_12], %12 {strides = array<i32>} : memref<4x2001xf32, #tpu.memory_space<vmem>>, vector<4x2001xf32>,
    } else {
    }
    %c0 = arith.constant 0 : index
    %c0_1 = arith.constant 0 : index
    %3 = vector.load %arg6[%c0, %c0_1] : memref<4x2001xf32, #tpu.memory_space<vmem>>, vector<4x2001xf32>
    %c0_2 = arith.constant 0 : index
    %c0_3 = arith.constant 0 : index
    %4 = vector.load %arg2[%c0_2, %c0_3] : memref<4x32xf32, #tpu.memory_space<vmem>>, vector<4x32xf32>
    %c0_4 = arith.constant 0 : index
    %c0_5 = arith.constant 0 : index
    %5 = vector.load %arg3[%c0_4, %c0_5] : memref<32x2001xf32, #tpu.memory_space<vmem>>, vector<32x2001xf32>
    %cst = arith.constant dense<0.000000e+00> : vector<4x2001xf32>
    %6 = tpu.matmul %4, %5, %cst {dimension_numbers = #tpu.dot_dimension_numbers<[1], [0], [0], [1], [0, 0, 1, 1], [], []>} : vector<4x32xf32>, vector<32x2001xf32>, vector<4x2001xf32> -> vector<4x2001xf32>
    %7 = arith.addf %3, %6 : vector<4x2001xf32>
    %c0_6 = arith.constant 0 : index
    %c0_7 = arith.constant 0 : index
    %8 = vector.load %arg6[%c0_6, %c0_7] : memref<4x2001xf32, #tpu.memory_space<vmem>>, vector<4x2001xf32>
    tpu.vector_store %arg6[%c0_6, %c0_7], %7 {strides = array<i32>} : memref<4x2001xf32, #tpu.memory_space<vmem>>, vector<4x2001xf32>,
    %c0_i32_8 = arith.constant 0 : i32
    %9 = arith.cmpi eq, %arg1, %c0_i32_8 : i32
    %10 = arith.extui %9 : i1 to i32
    %c0_i32_9 = arith.constant 0 : i32
    %11 = arith.cmpi ne, %10, %c0_i32_9 : i32
    scf.if %11 {
      %c0_10 = arith.constant 0 : index
      %c0_11 = arith.constant 0 : index
      %12 = vector.load %arg6[%c0_10, %c0_11] : memref<4x2001xf32, #tpu.memory_space<vmem>>, vector<4x2001xf32>
      %c0_12 = arith.constant 0 : index
      %c0_13 = arith.constant 0 : index
      %13 = vector.load %arg4[%c0_12, %c0_13] : memref<1x2001xf32, #tpu.memory_space<vmem>>, vector<1x2001xf32>
      %14 = vector.broadcast %13 : vector<1x2001xf32> to vector<4x2001xf32>
      %15 = arith.addf %12, %14 : vector<4x2001xf32>
      %c0_14 = arith.constant 0 : index
      %c0_15 = arith.constant 0 : index
      %16 = vector.load %arg5[%c0_14, %c0_15] : memref<4x2001xf32, #tpu.memory_space<vmem>>, vector<4x2001xf32>
      tpu.vector_store %arg5[%c0_14, %c0_15], %15 {strides = array<i32>} : memref<4x2001xf32, #tpu.memory_space<vmem>>, vector<4x2001xf32>,
    } else {
    }
    return
  }
  func.func @transform_0(%arg0: i32, %arg1: i32) -> (i32, i32) {
    %c0_i32 = arith.constant 0 : i32
    %c0_i32_0 = arith.constant 0 : i32
    return %c0_i32, %arg1 : i32, i32
  }
  func.func @transform_1(%arg0: i32, %arg1: i32) -> (i32, i32) {
    %c0_i32 = arith.constant 0 : i32
    return %arg1, %arg0 : i32, i32
  }
  func.func @transform_2(%arg0: i32, %arg1: i32) -> (i32, i32) {
    %c0_i32 = arith.constant 0 : i32
    %c0_i32_0 = arith.constant 0 : i32
    return %c0_i32, %arg0 : i32, i32
  }
  func.func @transform_3(%arg0: i32, %arg1: i32) -> (i32, i32) {
    %c0_i32 = arith.constant 0 : i32
    %c0_i32_0 = arith.constant 0 : i32
    return %c0_i32, %arg0 : i32, i32
  }
}

</mosaic_0001>

<llo_original>
// kernel: cnn_ae_forward.6
$region0: #{cnn_ae_forward.6}
  #allocation0 [shape = 'u32[]', space=smem, size = 0x4, offset = 0x4, fixed_abs, tag = 'smem constant byte address 0x4 - core index']
  #allocation1 [shape = 'u32[144,128]{1,0:T(1,128)}', space=vmem, size = 0x12000, scoped, tag = 'internal scratch']
  #allocation2 [shape = 'f32[4,32]{1,0:T(4,128)}', space=vmem, size = 0x800, scoped, tag = 'scratch operand']
  %s0 = inlined_call_operand.vmem [shape: f32[4,64], index: 0, kind: input, shape index: {}]
  %s1 = inlined_call_operand.vmem [shape: f32[64,32], index: 1, kind: input, shape index: {}]
  %s2 = inlined_call_operand.vmem [shape: f32[1,32], index: 2, kind: input, shape index: {}]
  %s3 = inlined_call_operand.vmem [shape: f32[4,32], index: 3, kind: output, shape index: {}]
  %s4 = sld [smem:[#allocation0]]
  $region30: #{cnn_ae_forward.6} parent=0
    _
  %s6 = ssub.s32 1, %s4
  %s7 = scalar_select 0, %s6, %s4
  // Predicated region
  $region2: #{cnn_ae_forward.6} parent=0 // pred_check
    _
  $region3: #{cnn_ae_forward.6} parent=0 // pred_check_branch
    %9 = sbr.rel (0) target = $region5
  $region4: #{cnn_ae_forward.6} parent=0 // pred_region
    _
  $region5: #{cnn_ae_forward.6} parent=0 // pred_fallthru
    _
  // Predicated region
  $region6: #{cnn_ae_forward.6} parent=0 // pred_check
    _
  $region7: #{cnn_ae_forward.6} parent=0 // pred_check_branch
    %11 = sbr.rel (0) target = $region9
  $region8: #{cnn_ae_forward.6} parent=0 // pred_region
    _
  $region9: #{cnn_ae_forward.6} parent=0 // pred_fallthru
    _
  // Predicated region
  $region10: #{cnn_ae_forward.6} parent=0 // pred_check
    _
  $region11: #{cnn_ae_forward.6} parent=0 // pred_check_branch
    %13 = sbr.rel (0) target = $region13
  $region12: #{cnn_ae_forward.6} parent=0 // pred_region
    _
  $region13: #{cnn_ae_forward.6} parent=0 // pred_fallthru
    _
  %p14 = scmp.eq.s32.totalorder 0, 0
  // Predicated region
  $region14: #{cnn_ae_forward.6} parent=0 // pred_check
    %p15 = pneg %p14
  $region15: #{cnn_ae_forward.6} parent=0 // pred_check_branch
    %17 = sbr.rel (%p15) target = $region17
  $region16: #{cnn_ae_forward.6} parent=0 // pred_region
    %vm18 = vcmask 257024
    %19 = vst.msk [vmem:[#allocation2] sm:$0xf] %vm18, 0.0
  $region17: #{cnn_ae_forward.6} parent=0 // pred_fallthru
    _
  %v20 = vld [vmem:[#allocation2] sm:$0xf]
  %v21 = vld [vmem:[%s0] sm:$0xf]
  %v22 = vld [vmem:[%s1] sm:$0xff]
  %v23 = vld [vmem:[%s1 + $0x8] sm:$0xff]
  %v24 = vld [vmem:[%s1 + $0x10] sm:$0xff]
  %v25 = vld [vmem:[%s1 + $0x18] sm:$0xff]
  %v26 = vld [vmem:[%s1 + $0x20] sm:$0xff]
  %v27 = vld [vmem:[%s1 + $0x28] sm:$0xff]
  %v28 = vld [vmem:[%s1 + $0x30] sm:$0xff]
  %v29 = vld [vmem:[%s1 + $0x38] sm:$0xff]
  %vm30 = vcmask 523264
  %v32 = vsel %vm30, %v21, 0
  %34 = vmatprep.subr.mxu0 0.0
  %35 = vmatpush1.msra.mxu0 %v22
  %36 = vmatprep.subr.mxu0 0.0
  %37 = vmatpush1.msra.mxu0 %v23
  %38 = vmatprep.subr.mxu0 0.0
  %39 = vmatpush1.msra.mxu0 %v24
  %40 = vmatprep.subr.mxu0 0.0
  %41 = vmatpush1.msra.mxu0 %v25
  %42 = vmatprep.subr.mxu0 0.0
  %43 = vmatpush1.msra.mxu0 %v26
  %44 = vmatprep.subr.mxu0 0.0
  %45 = vmatpush1.msra.mxu0 %v27
  %46 = vmatprep.subr.mxu0 0.0
  %47 = vmatpush1.msra.mxu0 %v28
  %48 = vmatprep.subr.mxu0 0.0
  %49 = vmatpush1.msra.mxu0 %v29
  %50 = vmatprep.subr.mxu0 0.0
  %51 = vmatpush1.msra.mxu0 0.0
  %52 = vmatprep.subr.mxu0 0.0
  %53 = vmatpush1.msra.mxu0 0.0
  %54 = vmatprep.subr.mxu0 0.0
  %55 = vmatpush1.msra.mxu0 0.0
  %56 = vmatprep.subr.mxu0 0.0
  %57 = vmatpush1.msra.mxu0 0.0
  %58 = vmatprep.subr.mxu0 0.0
  %59 = vmatpush1.msra.mxu0 0.0
  %60 = vmatprep.subr.mxu0 0.0
  %61 = vmatpush1.msra.mxu0 0.0
  %62 = vmatprep.subr.mxu0 0.0
  %63 = vmatpush1.msra.mxu0 0.0
  %64 = vmatprep.subr.mxu0 0.0
  %65 = vmatpush1.msra.mxu0 0.0
  %66 = vmatprep.subr.mxu0 0.0
  %67 = vmatpush1.msra.mxu0 0.0
  %68 = vmatprep.subr.mxu0 0.0
  %69 = vmatpush1.msra.mxu0 0.0
  %70 = vmatprep.subr.mxu0 0.0
  %71 = vmatpush1.msra.mxu0 0.0
  %72 = vmatprep.subr.mxu0 0.0
  %73 = vmatpush1.msra.mxu0 0.0
  %74 = vmatprep.subr.mxu0 0.0
  %75 = vmatpush1.msra.mxu0 0.0
  %76 = vmatprep.subr.mxu0 0.0
  %77 = vmatpush1.msra.mxu0 0.0
  %78 = vmatprep.subr.mxu0 0.0
  %79 = vmatpush1.msra.mxu0 0.0
  %80 = vmatprep.subr.mxu0 0.0
  %81 = vmatpush1.msra.mxu0 0.0
  %82 = vmatprep.subr.mxu0 0.0
  %83 = vmatpush1.msra.mxu0 0.0
  %84 = vmatprep.subr.mxu0 0.0
  %85 = vmatpush1.msra.mxu0 0.0
  %86 = vmatprep.subr.mxu0 0.0
  %87 = vmatpush1.msra.mxu0 0.0
  %88 = vmatprep.subr.mxu0 0.0
  %89 = vmatpush1.msra.mxu0 0.0
  %90 = vmatprep.subr.mxu0 0.0
  %91 = vmatpush1.msra.mxu0 0.0
  %92 = vmatprep.subr.mxu0 0.0
  %93 = vmatpush1.msra.mxu0 0.0
  %94 = vmatprep.subr.mxu0 0.0
  %95 = vmatpush1.msra.mxu0 0.0
  %96 = vmatprep.subr.mxu0 0.0
  %97 = vmatpush1.msra.mxu0 0.0
  %98 = vmatprep.mubr.f32.mxu0 0.0
  %99 = vmatmul.mubr.f32.gmra.mrb[0].mxu0 %v32
  %v100 = vpop.f32.mrb[0].mxu0
  %v101 = vadd.f32 0.0, %v100
  %v102 = vpop.f32.mrb[0].mxu0
  %103 = vdwg.mxu0
  %v104 = vadd.f32 %v20, %v101
  %vm105 = vcmask 257024
  %106 = vst.msk [vmem:[#allocation2] sm:$0xf] %vm105, %v104
  // Predicated region
  $region18: #{cnn_ae_forward.6} parent=0 // pred_check
    %p107 = pneg %p14
  $region19: #{cnn_ae_forward.6} parent=0 // pred_check_branch
    %109 = sbr.rel (%p107) target = $region21
  $region20: #{cnn_ae_forward.6} parent=0 // pred_region
    %v110 = vld [vmem:[#allocation2] sm:$0xf]
    %v111 = vld [vmem:[%s2] sm:$0x1]
    %v113 = vlaneseq
    %v114 = vshrl.u32 %v113, 7
    %v115 = vsub.s32 0, %v114
    %v116 = vrot.slane %v111, %v115
    %v118 = vadd.f32 %v110, %v116
    %v119 = vmax.f32 %v118, 0.0
    %120 = vst.msk [vmem:[%s3] sm:$0xf] %vm105, %v119
  $region21: #{cnn_ae_forward.6} parent=0 // pred_fallthru
    _
  // Predicated region
  $region22: #{cnn_ae_forward.6} parent=0 // pred_check
    _
  $region23: #{cnn_ae_forward.6} parent=0 // pred_check_branch
    %122 = sbr.rel (0) target = $region25
  $region24: #{cnn_ae_forward.6} parent=0 // pred_region
    _
  $region25: #{cnn_ae_forward.6} parent=0 // pred_fallthru
    _
  // Predicated region
  $region26: #{cnn_ae_forward.6} parent=0 // pred_check
    _
  $region27: #{cnn_ae_forward.6} parent=0 // pred_check_branch
    %124 = sbr.rel (0) target = $region29
  $region28: #{cnn_ae_forward.6} parent=0 // pred_region
    _
  $region29: #{cnn_ae_forward.6} parent=0 // pred_fallthru
    _

// kernel: cnn_ae_forward.5
$region0: #{cnn_ae_forward.5}
  #allocation0 [shape = 'u32[]', space=smem, size = 0x4, offset = 0x4, fixed_abs, tag = 'smem constant byte address 0x4 - core index']
  #allocation1 [shape = 'u32[144,128]{1,0:T(1,128)}', space=vmem, size = 0x12000, scoped, tag = 'internal scratch']
  #allocation2 [shape = 'f32[4,64]{1,0:T(4,128)}', space=vmem, size = 0x800, scoped, tag = 'scratch operand']
  %s0 = inlined_call_operand.vmem [shape: f32[4,128], index: 0, kind: input, shape index: {}]
  %s1 = inlined_call_operand.vmem [shape: f32[128,64], index: 1, kind: input, shape index: {}]
  %s2 = inlined_call_operand.vmem [shape: f32[1,64], index: 2, kind: input, shape index: {}]
  %s3 = inlined_call_operand.vmem [shape: f32[4,64], index: 3, kind: output, shape index: {}]
  %s4 = sld [smem:[#allocation0]]
  $region30: #{cnn_ae_forward.5} parent=0
    _
  %s6 = ssub.s32 1, %s4
  %s7 = scalar_select 0, %s6, %s4
  // Predicated region
  $region2: #{cnn_ae_forward.5} parent=0 // pred_check
    _
  $region3: #{cnn_ae_forward.5} parent=0 // pred_check_branch
    %9 = sbr.rel (0) target = $region5
  $region4: #{cnn_ae_forward.5} parent=0 // pred_region
    _
  $region5: #{cnn_ae_forward.5} parent=0 // pred_fallthru
    _
  // Predicated region
  $region6: #{cnn_ae_forward.5} parent=0 // pred_check
    _
  $region7: #{cnn_ae_forward.5} parent=0 // pred_check_branch
    %11 = sbr.rel (0) target = $region9
  $region8: #{cnn_ae_forward.5} parent=0 // pred_region
    _
  $region9: #{cnn_ae_forward.5} parent=0 // pred_fallthru
    _
  // Predicated region
  $region10: #{cnn_ae_forward.5} parent=0 // pred_check
    _
  $region11: #{cnn_ae_forward.5} parent=0 // pred_check_branch
    %13 = sbr.rel (0) target = $region13
  $region12: #{cnn_ae_forward.5} parent=0 // pred_region
    _
  $region13: #{cnn_ae_forward.5} parent=0 // pred_fallthru
    _
  %p14 = scmp.eq.s32.totalorder 0, 0
  // Predicated region
  $region14: #{cnn_ae_forward.5} parent=0 // pred_check
    %p15 = pneg %p14
  $region15: #{cnn_ae_forward.5} parent=0 // pred_check_branch
    %17 = sbr.rel (%p15) target = $region17
  $region16: #{cnn_ae_forward.5} parent=0 // pred_region
    %vm18 = vcmask 519168
    %19 = vst.msk [vmem:[#allocation2] sm:$0xf] %vm18, 0.0
  $region17: #{cnn_ae_forward.5} parent=0 // pred_fallthru
    _
  %v20 = vld [vmem:[#allocation2] sm:$0xf]
  %v21 = vld [vmem:[%s0] sm:$0xf]
  %v22 = vld [vmem:[%s1] sm:$0xff]
  %v23 = vld [vmem:[%s1 + $0x8] sm:$0xff]
  %v24 = vld [vmem:[%s1 + $0x10] sm:$0xff]
  %v25 = vld [vmem:[%s1 + $0x18] sm:$0xff]
  %v26 = vld [vmem:[%s1 + $0x20] sm:$0xff]
  %v27 = vld [vmem:[%s1 + $0x28] sm:$0xff]
  %v28 = vld [vmem:[%s1 + $0x30] sm:$0xff]
  %v29 = vld [vmem:[%s1 + $0x38] sm:$0xff]
  %v30 = vld [vmem:[%s1 + $0x40] sm:$0xff]
  %v31 = vld [vmem:[%s1 + $0x48] sm:$0xff]
  %v32 = vld [vmem:[%s1 + $0x50] sm:$0xff]
  %v33 = vld [vmem:[%s1 + $0x58] sm:$0xff]
  %v34 = vld [vmem:[%s1 + $0x60] sm:$0xff]
  %v35 = vld [vmem:[%s1 + $0x68] sm:$0xff]
  %v36 = vld [vmem:[%s1 + $0x70] sm:$0xff]
  %v37 = vld [vmem:[%s1 + $0x78] sm:$0xff]
  %38 = vmatprep.subr.mxu0 0.0
  %39 = vmatpush1.msra.mxu0 %v22
  %40 = vmatprep.subr.mxu0 0.0
  %41 = vmatpush1.msra.mxu0 %v23
  %42 = vmatprep.subr.mxu0 0.0
  %43 = vmatpush1.msra.mxu0 %v24
  %44 = vmatprep.subr.mxu0 0.0
  %45 = vmatpush1.msra.mxu0 %v25
  %46 = vmatprep.subr.mxu0 0.0
  %47 = vmatpush1.msra.mxu0 %v26
  %48 = vmatprep.subr.mxu0 0.0
  %49 = vmatpush1.msra.mxu0 %v27
  %50 = vmatprep.subr.mxu0 0.0
  %51 = vmatpush1.msra.mxu0 %v28
  %52 = vmatprep.subr.mxu0 0.0
  %53 = vmatpush1.msra.mxu0 %v29
  %54 = vmatprep.subr.mxu0 0.0
  %55 = vmatpush1.msra.mxu0 %v30
  %56 = vmatprep.subr.mxu0 0.0
  %57 = vmatpush1.msra.mxu0 %v31
  %58 = vmatprep.subr.mxu0 0.0
  %59 = vmatpush1.msra.mxu0 %v32
  %60 = vmatprep.subr.mxu0 0.0
  %61 = vmatpush1.msra.mxu0 %v33
  %62 = vmatprep.subr.mxu0 0.0
  %63 = vmatpush1.msra.mxu0 %v34
  %64 = vmatprep.subr.mxu0 0.0
  %65 = vmatpush1.msra.mxu0 %v35
  %66 = vmatprep.subr.mxu0 0.0
  %67 = vmatpush1.msra.mxu0 %v36
  %68 = vmatprep.subr.mxu0 0.0
  %69 = vmatpush1.msra.mxu0 %v37
  %70 = vmatprep.subr.mxu0 0.0
  %71 = vmatpush1.msra.mxu0 0.0
  %72 = vmatprep.subr.mxu0 0.0
  %73 = vmatpush1.msra.mxu0 0.0
  %74 = vmatprep.subr.mxu0 0.0
  %75 = vmatpush1.msra.mxu0 0.0
  %76 = vmatprep.subr.mxu0 0.0
  %77 = vmatpush1.msra.mxu0 0.0
  %78 = vmatprep.subr.mxu0 0.0
  %79 = vmatpush1.msra.mxu0 0.0
  %80 = vmatprep.subr.mxu0 0.0
  %81 = vmatpush1.msra.mxu0 0.0
  %82 = vmatprep.subr.mxu0 0.0
  %83 = vmatpush1.msra.mxu0 0.0
  %84 = vmatprep.subr.mxu0 0.0
  %85 = vmatpush1.msra.mxu0 0.0
  %86 = vmatprep.subr.mxu0 0.0
  %87 = vmatpush1.msra.mxu0 0.0
  %88 = vmatprep.subr.mxu0 0.0
  %89 = vmatpush1.msra.mxu0 0.0
  %90 = vmatprep.subr.mxu0 0.0
  %91 = vmatpush1.msra.mxu0 0.0
  %92 = vmatprep.subr.mxu0 0.0
  %93 = vmatpush1.msra.mxu0 0.0
  %94 = vmatprep.subr.mxu0 0.0
  %95 = vmatpush1.msra.mxu0 0.0
  %96 = vmatprep.subr.mxu0 0.0
  %97 = vmatpush1.msra.mxu0 0.0
  %98 = vmatprep.subr.mxu0 0.0
  %99 = vmatpush1.msra.mxu0 0.0
  %100 = vmatprep.subr.mxu0 0.0
  %101 = vmatpush1.msra.mxu0 0.0
  %102 = vmatprep.mubr.f32.mxu0 0.0
  %103 = vmatmul.mubr.f32.gmra.mrb[0].mxu0 %v21
  %v104 = vpop.f32.mrb[0].mxu0
  %v105 = vadd.f32 0.0, %v104
  %v106 = vpop.f32.mrb[0].mxu0
  %107 = vdwg.mxu0
  %v108 = vadd.f32 %v20, %v105
  %vm109 = vcmask 519168
  %110 = vst.msk [vmem:[#allocation2] sm:$0xf] %vm109, %v108
  // Predicated region
  $region18: #{cnn_ae_forward.5} parent=0 // pred_check
    %p111 = pneg %p14
  $region19: #{cnn_ae_forward.5} parent=0 // pred_check_branch
    %113 = sbr.rel (%p111) target = $region21
  $region20: #{cnn_ae_forward.5} parent=0 // pred_region
    %v114 = vld [vmem:[#allocation2] sm:$0xf]
    %v115 = vld [vmem:[%s2] sm:$0x1]
    %v117 = vlaneseq
    %v118 = vshrl.u32 %v117, 7
    %v119 = vsub.s32 0, %v118
    %v120 = vrot.slane %v115, %v119
    %v122 = vadd.f32 %v114, %v120
    %v123 = vmax.f32 %v122, 0.0
    %124 = vst.msk [vmem:[%s3] sm:$0xf] %vm109, %v123
  $region21: #{cnn_ae_forward.5} parent=0 // pred_fallthru
    _
  // Predicated region
  $region22: #{cnn_ae_forward.5} parent=0 // pred_check
    _
  $region23: #{cnn_ae_forward.5} parent=0 // pred_check_branch
    %126 = sbr.rel (0) target = $region25
  $region24: #{cnn_ae_forward.5} parent=0 // pred_region
    _
  $region25: #{cnn_ae_forward.5} parent=0 // pred_fallthru
    _
  // Predicated region
  $region26: #{cnn_ae_forward.5} parent=0 // pred_check
    _
  $region27: #{cnn_ae_forward.5} parent=0 // pred_check_branch
    %128 = sbr.rel (0) target = $region29
  $region28: #{cnn_ae_forward.5} parent=0 // pred_region
    _
  $region29: #{cnn_ae_forward.5} parent=0 // pred_fallthru
    _

// kernel: cnn_ae_forward.4
$region0: #{cnn_ae_forward.4}
  #allocation0 [shape = 'u32[]', space=smem, size = 0x4, offset = 0x4, fixed_abs, tag = 'smem constant byte address 0x4 - core index']
  #allocation1 [shape = 'u32[144,128]{1,0:T(1,128)}', space=vmem, size = 0x12000, scoped, tag = 'internal scratch']
  %s0 = inlined_call_operand.vmem [shape: f32[32,1], index: 0, kind: input, shape index: {}]
  %s1 = inlined_call_operand.vmem [shape: f32[3,32], index: 1, kind: input, shape index: {}]
  %s2 = inlined_call_operand.vmem [shape: f32[1,32], index: 2, kind: input, shape index: {}]
  %s3 = inlined_call_operand.vmem [shape: f32[96,32], index: 3, kind: input, shape index: {}]
  %s4 = inlined_call_operand.vmem [shape: f32[1,32], index: 4, kind: input, shape index: {}]
  %s5 = inlined_call_operand.hbm [shape: f32[96,64], index: 5, kind: input, shape index: {}]
  %s6 = inlined_call_operand.vmem [shape: f32[1,64], index: 6, kind: input, shape index: {}]
  %s7 = inlined_call_operand.hbm [shape: f32[192,64], index: 7, kind: input, shape index: {}]
  %s8 = inlined_call_operand.vmem [shape: f32[1,64], index: 8, kind: input, shape index: {}]
  %s9 = inlined_call_operand.vmem [shape: f32[8,64], index: 9, kind: output, shape index: {}]
  %s10 = sld [smem:[#allocation0]]
  $region54: #{cnn_ae_forward.4} parent=0
    _
  %s12 = ssub.s32 1, %s10
  %s13 = scalar_select 0, %s12, %s10
  $region1: #{cnn_ae_forward.4} parent=0
    #allocation2 [shape = 'u8[49152]{0}', space=vmem, size = 0xc000, scoped, tag = 'input window, operand 5, single buffered']
    #allocation3 [shape = 's32[1]{0}', space=sflag, size = 0x4, scoped, tag = 'scoped memory for cnn_ae_forward.4']
    #allocation4 [shape = 'u8[98304]{0}', space=vmem, size = 0x18000, scoped, tag = 'input window, operand 7, single buffered']
    #allocation5 [shape = 's32[1]{0}', space=sflag, size = 0x4, scoped, tag = 'scoped memory for cnn_ae_forward.4']
    %14 = vsyncpa [#allocation3], 0
    %15 = vsyncpa [#allocation5], 0
    // Predicated region
    $region2: #{cnn_ae_forward.4} parent=1 // pred_check
      _
    $region3: #{cnn_ae_forward.4} parent=1 // pred_check_branch
      %17 = sbr.rel (0) target = $region5
    $region4: #{cnn_ae_forward.4} parent=1 // pred_region
      _
    $region5: #{cnn_ae_forward.4} parent=1 // pred_fallthru
      _
    // Predicated region
    $region6: #{cnn_ae_forward.4} parent=1 // pred_check
      _
    $region7: #{cnn_ae_forward.4} parent=1 // pred_check_branch
      %19 = sbr.rel (0) target = $region9
    $region8: #{cnn_ae_forward.4} parent=1 // pred_region
      _
    $region9: #{cnn_ae_forward.4} parent=1 // pred_fallthru
      _
    // Predicated region
    $region10: #{cnn_ae_forward.4} parent=1 // pred_check
      _
    $region11: #{cnn_ae_forward.4} parent=1 // pred_check_branch
      %21 = sbr.rel (0) target = $region13
    $region12: #{cnn_ae_forward.4} parent=1 // pred_region
      _
    $region13: #{cnn_ae_forward.4} parent=1 // pred_fallthru
      _
    // Predicated region
    $region14: #{cnn_ae_forward.4} parent=1 // pred_check
      _
    $region15: #{cnn_ae_forward.4} parent=1 // pred_check_branch
      %23 = sbr.rel (0) target = $region17
    $region16: #{cnn_ae_forward.4} parent=1 // pred_region
      _
    $region17: #{cnn_ae_forward.4} parent=1 // pred_fallthru
      _
    // Predicated region
    $region18: #{cnn_ae_forward.4} parent=1 // pred_check
      _
    $region19: #{cnn_ae_forward.4} parent=1 // pred_check_branch
      %25 = sbr.rel (0) target = $region21
    $region20: #{cnn_ae_forward.4} parent=1 // pred_region
      _
    $region21: #{cnn_ae_forward.4} parent=1 // pred_fallthru
      _
    // Predicated region
    $region22: #{cnn_ae_forward.4} parent=1 // pred_check
      _
    $region23: #{cnn_ae_forward.4} parent=1 // pred_check_branch
      %27 = sbr.rel (0) target = $region25
    $region24: #{cnn_ae_forward.4} parent=1 // pred_region
      %s29 = ssub.s32 1536, 1536
      %30 = vsyncadd [#allocation3], %s29
      %s31 = sshll.u32 [#allocation2], 4
      %s32 = int_to_ptr.vmem [resolvable:$true] %s31
      %37 = dma.hbm_to_vmem [thread:$0]  %s5, 1536, %s32, [#allocation3], 128, 128, 8
    $region25: #{cnn_ae_forward.4} parent=1 // pred_fallthru
      _
    // Predicated region
    $region26: #{cnn_ae_forward.4} parent=1 // pred_check
      _
    $region27: #{cnn_ae_forward.4} parent=1 // pred_check_branch
      %39 = sbr.rel (0) target = $region29
    $region28: #{cnn_ae_forward.4} parent=1 // pred_region
      _
    $region29: #{cnn_ae_forward.4} parent=1 // pred_fallthru
      _
    // Predicated region
    $region30: #{cnn_ae_forward.4} parent=1 // pred_check
      _
    $region31: #{cnn_ae_forward.4} parent=1 // pred_check_branch
      %41 = sbr.rel (0) target = $region33
    $region32: #{cnn_ae_forward.4} parent=1 // pred_region
      %s43 = ssub.s32 3072, 3072
      %44 = vsyncadd [#allocation5], %s43
      %s45 = sshll.u32 [#allocation4], 4
      %s46 = int_to_ptr.vmem [resolvable:$true] %s45
      %51 = dma.hbm_to_vmem [thread:$0]  %s7, 3072, %s46, [#allocation5], 128, 128, 8
    $region33: #{cnn_ae_forward.4} parent=1 // pred_fallthru
      _
    // Predicated region
    $region34: #{cnn_ae_forward.4} parent=1 // pred_check
      _
    $region35: #{cnn_ae_forward.4} parent=1 // pred_check_branch
      %53 = sbr.rel (0) target = $region37
    $region36: #{cnn_ae_forward.4} parent=1 // pred_region
      _
    $region37: #{cnn_ae_forward.4} parent=1 // pred_fallthru
      _
    // Predicated region
    $region38: #{cnn_ae_forward.4} parent=1 // pred_check
      _
    $region39: #{cnn_ae_forward.4} parent=1 // pred_check_branch
      %55 = sbr.rel (0) target = $region41
    $region40: #{cnn_ae_forward.4} parent=1 // pred_region
      %56 = dma.done [#allocation3], 1536
    $region41: #{cnn_ae_forward.4} parent=1 // pred_fallthru
      _
    // Predicated region
    $region42: #{cnn_ae_forward.4} parent=1 // pred_check
      _
    $region43: #{cnn_ae_forward.4} parent=1 // pred_check_branch
      %58 = sbr.rel (0) target = $region45
    $region44: #{cnn_ae_forward.4} parent=1 // pred_region
      %59 = dma.done [#allocation5], 3072
    $region45: #{cnn_ae_forward.4} parent=1 // pred_fallthru
      _
    %v60 = vld [vmem:[%s0] sm:$0xff]
    %v61 = vld [vmem:[%s0 + $0x8] sm:$0xff]
    %v62 = vld [vmem:[%s0 + $0x10] sm:$0xff]
    %v63 = vld [vmem:[%s0 + $0x18] sm:$0xff]
    %v64 = vld [vmem:[%s1] sm:$0x7]
    %vm69 = vcmask 1040384
    %v70 = vrot.slane %v60, 7
    %v71 = vrot.slane %v61, 7
    %v72 = vsel %vm69, %v70, %v71
    %v73 = vrot.slane %v62, 7
    %v74 = vsel %vm69, %v71, %v73
    %v75 = vrot.slane %v63, 7
    %v76 = vsel %vm69, %v73, %v75
    %v81 = vsel %vm69, 0.0, %v70
    %vm82 = vcmask 1046528
    %v83 = vrot.slane %v60, 1
    %v84 = vrot.slane %v61, 1
    %v85 = vsel %vm82, %v83, %v84
    %v86 = vrot.slane %v62, 1
    %v87 = vsel %vm82, %v84, %v86
    %v88 = vrot.slane %v63, 1
    %v89 = vsel %vm82, %v86, %v88
    %v94 = vsel %vm82, %v88, 0.0
    %v95 = vlaneseq
    %v96 = vshrl.u32 %v95, 7
    %v97 = vadd.s32 %v96, 8
    %v98 = vadd.s32 %v96, 16
    %v99 = vadd.s32 %v96, 24
    %vm100 = vcmp.lt.s32.totalorder %v96, 0
    %v101 = vsub.s32 0, %v96
    %v102 = vsel %vm100, %v101, %v96
    %v103 = vshrl.u32 %v102, 4
    %v104 = vand.u32 %v102, 15
    %v105 = vsub.s32 0, %v104
    %v106 = vsel %vm100, %v105, %v104
    %vm107 = vcmp.lt.s32.totalorder %v97, 0
    %v108 = vsub.s32 0, %v97
    %v109 = vsel %vm107, %v108, %v97
    %v110 = vshrl.u32 %v109, 4
    %v111 = vand.u32 %v109, 15
    %v112 = vsub.s32 0, %v111
    %v113 = vsel %vm107, %v112, %v111
    %vm114 = vcmp.lt.s32.totalorder %v98, 0
    %v115 = vsub.s32 0, %v98
    %v116 = vsel %vm114, %v115, %v98
    %v117 = vshrl.u32 %v116, 4
    %v118 = vand.u32 %v116, 15
    %v119 = vsub.s32 0, %v118
    %v120 = vsel %vm114, %v119, %v118
    %vm121 = vcmp.lt.s32.totalorder %v99, 0
    %v122 = vsub.s32 0, %v99
    %v123 = vsel %vm121, %v122, %v99
    %v124 = vshrl.u32 %v123, 4
    %v125 = vand.u32 %v123, 15
    %v126 = vsub.s32 0, %v125
    %v127 = vsel %vm121, %v126, %v125
    %vm128 = vcmp.ne.s32.totalorder %v106, 0
    %vm129 = vcmp.ne.s32.totalorder %v113, 0
    %vm130 = vcmp.ne.s32.totalorder %v120, 0
    %vm131 = vcmp.ne.s32.totalorder %v127, 0
    %vm132 = vcmp.lt.s32.totalorder %v106, 0
    %vm133 = vcmp.lt.s32.totalorder %v113, 0
    %vm134 = vcmp.lt.s32.totalorder %v120, 0
    %vm135 = vcmp.lt.s32.totalorder %v127, 0
    %vm136 = vmand %vm132, %vm128
    %vm137 = vmand %vm133, %vm129
    %vm138 = vmand %vm134, %vm130
    %vm139 = vmand %vm135, %vm131
    %v140 = vadd.s32 %v106, 16
    %v141 = vadd.s32 %v113, 16
    %v142 = vadd.s32 %v120, 16
    %v143 = vadd.s32 %v127, 16
    %v144 = vsel %vm136, %v140, %v106
    %v145 = vsel %vm137, %v141, %v113
    %v146 = vsel %vm138, %v142, %v120
    %v147 = vsel %vm139, %v143, %v127
    %vm148 = vcmp.eq.s32.totalorder %v144, 0
    %vm149 = vcmp.eq.s32.totalorder %v145, 0
    %vm150 = vcmp.eq.s32.totalorder %v146, 0
    %vm151 = vcmp.eq.s32.totalorder %v147, 0
    %v152 = vsel %vm148, 0.0, %v81
    %v153 = vsel %vm149, 0.0, %v72
    %v154 = vsel %vm150, 0.0, %v74
    %v155 = vsel %vm151, 0.0, %v76
    %vm156 = vcmp.eq.s32.totalorder %v144, 15
    %vm157 = vcmp.eq.s32.totalorder %v145, 15
    %vm158 = vcmp.eq.s32.totalorder %v146, 15
    %vm159 = vcmp.eq.s32.totalorder %v147, 15
    %v160 = vsel %vm156, 0.0, %v85
    %v161 = vsel %vm157, 0.0, %v87
    %v162 = vsel %vm158, 0.0, %v89
    %v163 = vsel %vm159, 0.0, %v94
    %165 = vset.pattern.permute.xlu0 0
    %166 = vperm.xlu0 %165, %v152
    %v167 = vpop.permute.xlu0 %166
    %170 = vset.pattern.permute.xlu0 0
    %171 = vperm.xlu0 %170, %v153
    %v172 = vpop.permute.xlu0 %171
    %175 = vset.pattern.permute.xlu0 0
    %176 = vperm.xlu0 %175, %v154
    %v177 = vpop.permute.xlu0 %176
    %180 = vset.pattern.permute.xlu0 0
    %181 = vperm.xlu0 %180, %v155
    %v182 = vpop.permute.xlu0 %181
    %v184 = vlaneseq
    %v185 = vshrl.u32 %v184, 7
    %v186 = vsub.s32 0, %v185
    %v187 = vrot.slane %v64, %v186
    %v188 = vmul.f32 %v167, %v187
    %v189 = vmul.f32 %v172, %v187
    %v190 = vmul.f32 %v177, %v187
    %v191 = vmul.f32 %v182, %v187
    %192 = vset.pattern.permute.xlu0 0
    %193 = vperm.xlu0 %192, %v60
    %v194 = vpop.permute.xlu0 %193
    %196 = vset.pattern.permute.xlu0 0
    %197 = vperm.xlu0 %196, %v61
    %v198 = vpop.permute.xlu0 %197
    %200 = vset.pattern.permute.xlu0 0
    %201 = vperm.xlu0 %200, %v62
    %v202 = vpop.permute.xlu0 %201
    %204 = vset.pattern.permute.xlu0 0
    %205 = vperm.xlu0 %204, %v63
    %v206 = vpop.permute.xlu0 %205
    %v208 = vlaneseq
    %v209 = vshrl.u32 %v208, 7
    %v210 = vsub.s32 1, %v209
    %v211 = vrot.slane %v64, %v210
    %v212 = vmul.f32 %v194, %v211
    %v213 = vmul.f32 %v198, %v211
    %v214 = vmul.f32 %v202, %v211
    %v215 = vmul.f32 %v206, %v211
    %v216 = vadd.f32 %v188, %v212
    %v217 = vadd.f32 %v189, %v213
    %v218 = vadd.f32 %v190, %v214
    %v219 = vadd.f32 %v191, %v215
    %221 = vset.pattern.permute.xlu0 0
    %222 = vperm.xlu0 %221, %v160
    %v223 = vpop.permute.xlu0 %222
    %226 = vset.pattern.permute.xlu0 0
    %227 = vperm.xlu0 %226, %v161
    %v228 = vpop.permute.xlu0 %227
    %231 = vset.pattern.permute.xlu0 0
    %232 = vperm.xlu0 %231, %v162
    %v233 = vpop.permute.xlu0 %232
    %236 = vset.pattern.permute.xlu0 0
    %237 = vperm.xlu0 %236, %v163
    %v238 = vpop.permute.xlu0 %237
    %v240 = vlaneseq
    %v241 = vshrl.u32 %v240, 7
    %v242 = vsub.s32 2, %v241
    %v243 = vrot.slane %v64, %v242
    %v244 = vmul.f32 %v223, %v243
    %v245 = vmul.f32 %v228, %v243
    %v246 = vmul.f32 %v233, %v243
    %v247 = vmul.f32 %v238, %v243
    %v248 = vadd.f32 %v216, %v244
    %v249 = vadd.f32 %v217, %v245
    %v250 = vadd.f32 %v218, %v246
    %v251 = vadd.f32 %v219, %v247
    %v252 = vld [vmem:[%s2] sm:$0x1]
    %v254 = vlaneseq
    %v255 = vshrl.u32 %v254, 7
    %v256 = vsub.s32 0, %v255
    %v257 = vrot.slane %v252, %v256
    %v259 = vadd.f32 %v248, %v257
    %v260 = vadd.f32 %v249, %v257
    %v261 = vadd.f32 %v250, %v257
    %v262 = vadd.f32 %v251, %v257
    %v263 = vmax.f32 %v259, 0.0
    %v264 = vmax.f32 %v260, 0.0
    %v265 = vmax.f32 %v261, 0.0
    %v266 = vmax.f32 %v262, 0.0
    %v267 = vld [vmem:[%s3] sm:$0xff]
    %v268 = vld [vmem:[%s3 + $0x8] sm:$0xff]
    %v269 = vld [vmem:[%s3 + $0x10] sm:$0xff]
    %v270 = vld [vmem:[%s3 + $0x18] sm:$0xff]
    %v271 = vld [vmem:[%s3 + $0x20] sm:$0xff]
    %v272 = vld [vmem:[%s3 + $0x28] sm:$0xff]
    %v273 = vld [vmem:[%s3 + $0x30] sm:$0xff]
    %v274 = vld [vmem:[%s3 + $0x38] sm:$0xff]
    %v275 = vld [vmem:[%s3 + $0x40] sm:$0xff]
    %v276 = vld [vmem:[%s3 + $0x48] sm:$0xff]
    %v277 = vld [vmem:[%s3 + $0x50] sm:$0xff]
    %v278 = vld [vmem:[%s3 + $0x58] sm:$0xff]
    %v279 = vld [vmem:[%s4] sm:$0x1]
    %v284 = vrot.slane %v263, 7
    %v285 = vrot.slane %v264, 7
    %v286 = vsel %vm69, %v284, %v285
    %v287 = vrot.slane %v265, 7
    %v288 = vsel %vm69, %v285, %v287
    %v289 = vrot.slane %v266, 7
    %v290 = vsel %vm69, %v287, %v289
    %v295 = vsel %vm69, 0.0, %v284
    %v296 = vrot.slane %v263, 1
    %v297 = vrot.slane %v264, 1
    %v298 = vsel %vm82, %v296, %v297
    %v299 = vrot.slane %v265, 1
    %v300 = vsel %vm82, %v297, %v299
    %v301 = vrot.slane %v266, 1
    %v302 = vsel %vm82, %v299, %v301
    %v307 = vsel %vm82, %v301, 0.0
    %v308 = vsel %vm148, 1, 0
    %v309 = vsel %vm149, 1, 0
    %v310 = vsel %vm150, 1, 0
    %v311 = vsel %vm151, 1, 0
    %vm312 = vcmp.eq.s32.totalorder %v308, 1
    %vm313 = vcmp.eq.s32.totalorder %v309, 1
    %vm314 = vcmp.eq.s32.totalorder %v310, 1
    %vm315 = vcmp.eq.s32.totalorder %v311, 1
    %v316 = vsel %vm312, 0.0, %v295
    %v317 = vsel %vm313, 0.0, %v286
    %v318 = vsel %vm314, 0.0, %v288
    %v319 = vsel %vm315, 0.0, %v290
    %v320 = vsel %vm156, 1, 0
    %v321 = vsel %vm157, 1, 0
    %v322 = vsel %vm158, 1, 0
    %v323 = vsel %vm159, 1, 0
    %vm324 = vcmp.eq.s32.totalorder %v320, 1
    %vm325 = vcmp.eq.s32.totalorder %v321, 1
    %vm326 = vcmp.eq.s32.totalorder %v322, 1
    %vm327 = vcmp.eq.s32.totalorder %v323, 1
    %v328 = vsel %vm324, 0.0, %v298
    %v329 = vsel %vm325, 0.0, %v300
    %v330 = vsel %vm326, 0.0, %v302
    %v331 = vsel %vm327, 0.0, %v307
    %332 = vrot.lane.b32.xlu0 %v263, 32
    %v333 = vpop.permute.xlu0 %332
    %334 = vrot.lane.b32.xlu0 %v264, 32
    %v335 = vpop.permute.xlu0 %334
    %336 = vrot.lane.b32.xlu0 %v265, 32
    %v337 = vpop.permute.xlu0 %336
    %338 = vrot.lane.b32.xlu0 %v266, 32
    %v339 = vpop.permute.xlu0 %338
    %348 = vrot.lane.b32.xlu0 %v328, 64
    %v349 = vpop.permute.xlu0 %348
    %350 = vrot.lane.b32.xlu0 %v329, 64
    %v351 = vpop.permute.xlu0 %350
    %352 = vrot.lane.b32.xlu0 %v330, 64
    %v353 = vpop.permute.xlu0 %352
    %354 = vrot.lane.b32.xlu0 %v331, 64
    %v355 = vpop.permute.xlu0 %354
    %vm360 = vcmask 261120
    %v361 = vsel %vm360, %v316, %v333
    %v362 = vsel %vm360, %v317, %v335
    %v363 = vsel %vm360, %v318, %v337
    %v364 = vsel %vm360, %v319, %v339
    %vm365 = vcmask 523264
    %v366 = vsel %vm365, %v361, %v349
    %v367 = vsel %vm365, %v362, %v351
    %v368 = vsel %vm365, %v363, %v353
    %v369 = vsel %vm365, %v364, %v355
    %v371 = vlaneseq
    %v372 = vshrl.u32 %v371, 7
    %v373 = vsub.s32 0, %v372
    %v374 = vrot.slane %v279, %v373
    %vm376 = vcmask 785408
    %v378 = vsel %vm376, %v366, 0
    %v381 = vsel %vm376, %v367, 0
    %v384 = vsel %vm376, %v368, 0
    %v387 = vsel %vm376, %v369, 0
    %389 = vmatprep.subr.mxu0 0.0
    %390 = vmatpush1.msra.mxu0 %v267
    %391 = vmatprep.subr.mxu0 0.0
    %392 = vmatpush1.msra.mxu0 %v268
    %393 = vmatprep.subr.mxu0 0.0
    %394 = vmatpush1.msra.mxu0 %v269
    %395 = vmatprep.subr.mxu0 0.0
    %396 = vmatpush1.msra.mxu0 %v270
    %397 = vmatprep.subr.mxu0 0.0
    %398 = vmatpush1.msra.mxu0 %v271
    %399 = vmatprep.subr.mxu0 0.0
    %400 = vmatpush1.msra.mxu0 %v272
    %401 = vmatprep.subr.mxu0 0.0
    %402 = vmatpush1.msra.mxu0 %v273
    %403 = vmatprep.subr.mxu0 0.0
    %404 = vmatpush1.msra.mxu0 %v274
    %405 = vmatprep.subr.mxu0 0.0
    %406 = vmatpush1.msra.mxu0 %v275
    %407 = vmatprep.subr.mxu0 0.0
    %408 = vmatpush1.msra.mxu0 %v276
    %409 = vmatprep.subr.mxu0 0.0
    %410 = vmatpush1.msra.mxu0 %v277
    %411 = vmatprep.subr.mxu0 0.0
    %412 = vmatpush1.msra.mxu0 %v278
    %413 = vmatprep.subr.mxu0 0.0
    %414 = vmatpush1.msra.mxu0 0.0
    %415 = vmatprep.subr.mxu0 0.0
    %416 = vmatpush1.msra.mxu0 0.0
    %417 = vmatprep.subr.mxu0 0.0
    %418 = vmatpush1.msra.mxu0 0.0
    %419 = vmatprep.subr.mxu0 0.0
    %420 = vmatpush1.msra.mxu0 0.0
    %421 = vmatprep.subr.mxu0 0.0
    %422 = vmatpush1.msra.mxu0 0.0
    %423 = vmatprep.subr.mxu0 0.0
    %424 = vmatpush1.msra.mxu0 0.0
    %425 = vmatprep.subr.mxu0 0.0
    %426 = vmatpush1.msra.mxu0 0.0
    %427 = vmatprep.subr.mxu0 0.0
    %428 = vmatpush1.msra.mxu0 0.0
    %429 = vmatprep.subr.mxu0 0.0
    %430 = vmatpush1.msra.mxu0 0.0
    %431 = vmatprep.subr.mxu0 0.0
    %432 = vmatpush1.msra.mxu0 0.0
    %433 = vmatprep.subr.mxu0 0.0
    %434 = vmatpush1.msra.mxu0 0.0
    %435 = vmatprep.subr.mxu0 0.0
    %436 = vmatpush1.msra.mxu0 0.0
    %437 = vmatprep.subr.mxu0 0.0
    %438 = vmatpush1.msra.mxu0 0.0
    %439 = vmatprep.subr.mxu0 0.0
    %440 = vmatpush1.msra.mxu0 0.0
    %441 = vmatprep.subr.mxu0 0.0
    %442 = vmatpush1.msra.mxu0 0.0
    %443 = vmatprep.subr.mxu0 0.0
    %444 = vmatpush1.msra.mxu0 0.0
    %445 = vmatprep.subr.mxu0 0.0
    %446 = vmatpush1.msra.mxu0 0.0
    %447 = vmatprep.subr.mxu0 0.0
    %448 = vmatpush1.msra.mxu0 0.0
    %449 = vmatprep.subr.mxu0 0.0
    %450 = vmatpush1.msra.mxu0 0.0
    %451 = vmatprep.subr.mxu0 0.0
    %452 = vmatpush1.msra.mxu0 0.0
    %453 = vmatprep.mubr.f32.mxu0 0.0
    %454 = vmatmul.mubr.f32.gmra.mrb[0].mxu0 %v378
    %v455 = vpop.f32.mrb[0].mxu0
    %v456 = vadd.f32 %v374, %v455
    %v457 = vpop.f32.mrb[0].mxu0
    %458 = vmatprep.mubr.f32.mxu0 0.0
    %459 = vmatmul.mubr.f32.gmra.mrb[0].mxu0 %v381
    %v460 = vpop.f32.mrb[0].mxu0
    %v461 = vadd.f32 %v374, %v460
    %v462 = vpop.f32.mrb[0].mxu0
    %463 = vmatprep.mubr.f32.mxu0 0.0
    %464 = vmatmul.mubr.f32.gmra.mrb[0].mxu0 %v384
    %v465 = vpop.f32.mrb[0].mxu0
    %v466 = vadd.f32 %v374, %v465
    %v467 = vpop.f32.mrb[0].mxu0
    %468 = vmatprep.mubr.f32.mxu0 0.0
    %469 = vmatmul.mubr.f32.gmra.mrb[0].mxu0 %v387
    %v470 = vpop.f32.mrb[0].mxu0
    %v471 = vadd.f32 %v374, %v470
    %v472 = vpop.f32.mrb[0].mxu0
    %473 = vdwg.mxu0
    %v474 = vmax.f32 %v456, 0.0
    %v475 = vmax.f32 %v461, 0.0
    %v476 = vmax.f32 %v466, 0.0
    %v477 = vmax.f32 %v471, 0.0
    %v482 = vcombine.high %v474, %v474
    %v484 = vunpack.c.l.s4 1983009808
    %v485 = vunpack.c.0.s8 %v484
    %v486 = vlaneseq
    %v487 = vshrl.u32 %v486, 7
    %v488 = vsub.s32 %v485, %v487
    %v489 = vrot.slane %v474, %v488
    %v491 = vunpack.c.l.s4 1983009808
    %v492 = vunpack.c.0.s8 %v491
    %v493 = vlaneseq
    %v494 = vshrl.u32 %v493, 7
    %v495 = vsub.s32 %v492, %v494
    %v496 = vrot.slane %v482, %v495
    %v497 = vcombine.high %v489, %v489
    %v498 = vcombine.high %v496, %v496
    %v499 = vcombine.high %v475, %v475
    %v501 = vunpack.c.l.s4 1983009808
    %v502 = vunpack.c.0.s8 %v501
    %v503 = vlaneseq
    %v504 = vshrl.u32 %v503, 7
    %v505 = vsub.s32 %v502, %v504
    %v506 = vrot.slane %v475, %v505
    %v508 = vunpack.c.l.s4 1983009808
    %v509 = vunpack.c.0.s8 %v508
    %v510 = vlaneseq
    %v511 = vshrl.u32 %v510, 7
    %v512 = vsub.s32 %v509, %v511
    %v513 = vrot.slane %v499, %v512
    %v514 = vcombine.high %v506, %v506
    %v515 = vcombine.high %v513, %v513
    %v516 = vcombine.high %v476, %v476
    %v518 = vunpack.c.l.s4 1983009808
    %v519 = vunpack.c.0.s8 %v518
    %v520 = vlaneseq
    %v521 = vshrl.u32 %v520, 7
    %v522 = vsub.s32 %v519, %v521
    %v523 = vrot.slane %v476, %v522
    %v525 = vunpack.c.l.s4 1983009808
    %v526 = vunpack.c.0.s8 %v525
    %v527 = vlaneseq
    %v528 = vshrl.u32 %v527, 7
    %v529 = vsub.s32 %v526, %v528
    %v530 = vrot.slane %v516, %v529
    %v531 = vcombine.high %v523, %v523
    %v532 = vcombine.high %v530, %v530
    %v533 = vcombine.high %v477, %v477
    %v535 = vunpack.c.l.s4 1983009808
    %v536 = vunpack.c.0.s8 %v535
    %v537 = vlaneseq
    %v538 = vshrl.u32 %v537, 7
    %v539 = vsub.s32 %v536, %v538
    %v540 = vrot.slane %v477, %v539
    %v542 = vunpack.c.l.s4 1983009808
    %v543 = vunpack.c.0.s8 %v542
    %v544 = vlaneseq
    %v545 = vshrl.u32 %v544, 7
    %v546 = vsub.s32 %v543, %v545
    %v547 = vrot.slane %v533, %v546
    %v548 = vcombine.high %v540, %v540
    %v549 = vcombine.high %v547, %v547
    %vm566 = vcmask 254976
    %v567 = vsel %vm566, %v489, -inf
    %v568 = vrot.slane %v567, 4
    %v569 = vmax.f32 %v567, %v568
    %v570 = vrot.slane %v569, 2
    %v571 = vmax.f32 %v569, %v570
    %v572 = vrot.slane %v571, 1
    %v573 = vmax.f32 %v571, %v572
    %v574 = vsel %vm566, %v497, -inf
    %v575 = vrot.slane %v574, 4
    %v576 = vmax.f32 %v574, %v575
    %v577 = vrot.slane %v576, 2
    %v578 = vmax.f32 %v576, %v577
    %v579 = vrot.slane %v578, 1
    %v580 = vmax.f32 %v578, %v579
    %v581 = vsel %vm566, %v496, -inf
    %v582 = vrot.slane %v581, 4
    %v583 = vmax.f32 %v581, %v582
    %v584 = vrot.slane %v583, 2
    %v585 = vmax.f32 %v583, %v584
    %v586 = vrot.slane %v585, 1
    %v587 = vmax.f32 %v585, %v586
    %v588 = vsel %vm566, %v498, -inf
    %v589 = vrot.slane %v588, 4
    %v590 = vmax.f32 %v588, %v589
    %v591 = vrot.slane %v590, 2
    %v592 = vmax.f32 %v590, %v591
    %v593 = vrot.slane %v592, 1
    %v594 = vmax.f32 %v592, %v593
    %v595 = vsel %vm566, %v506, -inf
    %v596 = vrot.slane %v595, 4
    %v597 = vmax.f32 %v595, %v596
    %v598 = vrot.slane %v597, 2
    %v599 = vmax.f32 %v597, %v598
    %v600 = vrot.slane %v599, 1
    %v601 = vmax.f32 %v599, %v600
    %v602 = vsel %vm566, %v514, -inf
    %v603 = vrot.slane %v602, 4
    %v604 = vmax.f32 %v602, %v603
    %v605 = vrot.slane %v604, 2
    %v606 = vmax.f32 %v604, %v605
    %v607 = vrot.slane %v606, 1
    %v608 = vmax.f32 %v606, %v607
    %v609 = vsel %vm566, %v513, -inf
    %v610 = vrot.slane %v609, 4
    %v611 = vmax.f32 %v609, %v610
    %v612 = vrot.slane %v611, 2
    %v613 = vmax.f32 %v611, %v612
    %v614 = vrot.slane %v613, 1
    %v615 = vmax.f32 %v613, %v614
    %v616 = vsel %vm566, %v515, -inf
    %v617 = vrot.slane %v616, 4
    %v618 = vmax.f32 %v616, %v617
    %v619 = vrot.slane %v618, 2
    %v620 = vmax.f32 %v618, %v619
    %v621 = vrot.slane %v620, 1
    %v622 = vmax.f32 %v620, %v621
    %v623 = vsel %vm566, %v523, -inf
    %v624 = vrot.slane %v623, 4
    %v625 = vmax.f32 %v623, %v624
    %v626 = vrot.slane %v625, 2
    %v627 = vmax.f32 %v625, %v626
    %v628 = vrot.slane %v627, 1
    %v629 = vmax.f32 %v627, %v628
    %v630 = vsel %vm566, %v531, -inf
    %v631 = vrot.slane %v630, 4
    %v632 = vmax.f32 %v630, %v631
    %v633 = vrot.slane %v632, 2
    %v634 = vmax.f32 %v632, %v633
    %v635 = vrot.slane %v634, 1
    %v636 = vmax.f32 %v634, %v635
    %v637 = vsel %vm566, %v530, -inf
    %v638 = vrot.slane %v637, 4
    %v639 = vmax.f32 %v637, %v638
    %v640 = vrot.slane %v639, 2
    %v641 = vmax.f32 %v639, %v640
    %v642 = vrot.slane %v641, 1
    %v643 = vmax.f32 %v641, %v642
    %v644 = vsel %vm566, %v532, -inf
    %v645 = vrot.slane %v644, 4
    %v646 = vmax.f32 %v644, %v645
    %v647 = vrot.slane %v646, 2
    %v648 = vmax.f32 %v646, %v647
    %v649 = vrot.slane %v648, 1
    %v650 = vmax.f32 %v648, %v649
    %v651 = vsel %vm566, %v540, -inf
    %v652 = vrot.slane %v651, 4
    %v653 = vmax.f32 %v651, %v652
    %v654 = vrot.slane %v653, 2
    %v655 = vmax.f32 %v653, %v654
    %v656 = vrot.slane %v655, 1
    %v657 = vmax.f32 %v655, %v656
    %v658 = vsel %vm566, %v548, -inf
    %v659 = vrot.slane %v658, 4
    %v660 = vmax.f32 %v658, %v659
    %v661 = vrot.slane %v660, 2
    %v662 = vmax.f32 %v660, %v661
    %v663 = vrot.slane %v662, 1
    %v664 = vmax.f32 %v662, %v663
    %v665 = vsel %vm566, %v547, -inf
    %v666 = vrot.slane %v665, 4
    %v667 = vmax.f32 %v665, %v666
    %v668 = vrot.slane %v667, 2
    %v669 = vmax.f32 %v667, %v668
    %v670 = vrot.slane %v669, 1
    %v671 = vmax.f32 %v669, %v670
    %v672 = vsel %vm566, %v549, -inf
    %v673 = vrot.slane %v672, 4
    %v674 = vmax.f32 %v672, %v673
    %v675 = vrot.slane %v674, 2
    %v676 = vmax.f32 %v674, %v675
    %v677 = vrot.slane %v676, 1
    %v678 = vmax.f32 %v676, %v677
    %v679 = vld [vmem:[#allocation2] sm:$0xff]
    %v680 = vld [vmem:[#allocation2 + $0x8] sm:$0xff]
    %v681 = vld [vmem:[#allocation2 + $0x10] sm:$0xff]
    %v682 = vld [vmem:[#allocation2 + $0x18] sm:$0xff]
    %v683 = vld [vmem:[#allocation2 + $0x20] sm:$0xff]
    %v684 = vld [vmem:[#allocation2 + $0x28] sm:$0xff]
    %v685 = vld [vmem:[#allocation2 + $0x30] sm:$0xff]
    %v686 = vld [vmem:[#allocation2 + $0x38] sm:$0xff]
    %v687 = vld [vmem:[#allocation2 + $0x40] sm:$0xff]
    %v688 = vld [vmem:[#allocation2 + $0x48] sm:$0xff]
    %v689 = vld [vmem:[#allocation2 + $0x50] sm:$0xff]
    %v690 = vld [vmem:[#allocation2 + $0x58] sm:$0xff]
    %v691 = vld [vmem:[%s6] sm:$0x1]
    %vm707 = vcmask 1042434
    %v708 = vsel %vm707, %v580, %v573
    %vm709 = vcmask 1043459
    %v710 = vsel %vm709, %v587, %v708
    %vm711 = vcmask 1044484
    %v712 = vsel %vm711, %v594, %v710
    %vm713 = vcmask 1045509
    %v714 = vsel %vm713, %v601, %v712
    %vm715 = vcmask 1046534
    %v716 = vsel %vm715, %v608, %v714
    %vm717 = vcmask 1047559
    %v718 = vsel %vm717, %v615, %v716
    %vm719 = vcmask 1041409
    %v720 = vsel %vm719, %v629, %v622
    %v721 = vsel %vm707, %v636, %v720
    %v722 = vsel %vm709, %v643, %v721
    %v723 = vsel %vm711, %v650, %v722
    %v724 = vsel %vm713, %v657, %v723
    %v725 = vsel %vm715, %v664, %v724
    %v726 = vsel %vm717, %v671, %v725
    %v729 = vsel %vm69, 0.0, %v718
    %v731 = vsel %vm719, %v587, %v580
    %v732 = vsel %vm707, %v594, %v731
    %v733 = vsel %vm709, %v601, %v732
    %v734 = vsel %vm711, %v608, %v733
    %v735 = vsel %vm713, %v615, %v734
    %v736 = vsel %vm715, %v622, %v735
    %v737 = vsel %vm717, %v629, %v736
    %v738 = vsel %vm719, %v643, %v636
    %v739 = vsel %vm707, %v650, %v738
    %v740 = vsel %vm709, %v657, %v739
    %v741 = vsel %vm711, %v664, %v740
    %v742 = vsel %vm713, %v671, %v741
    %v743 = vsel %vm715, %v678, %v742
    %v746 = vsel %vm82, %v743, 0.0
    %vm747 = vcmp.lt.s32.totalorder %v96, 0
    %v748 = vsub.s32 0, %v96
    %v749 = vsel %vm747, %v748, %v96
    %v750 = vshrl.u32 %v749, 3
    %v751 = vand.u32 %v749, 7
    %v752 = vsub.s32 0, %v751
    %v753 = vsel %vm747, %v752, %v751
    %vm754 = vcmp.lt.s32.totalorder %v97, 0
    %v755 = vsub.s32 0, %v97
    %v756 = vsel %vm754, %v755, %v97
    %v757 = vshrl.u32 %v756, 3
    %v758 = vand.u32 %v756, 7
    %v759 = vsub.s32 0, %v758
    %v760 = vsel %vm754, %v759, %v758
    %vm761 = vcmp.ne.s32.totalorder %v753, 0
    %vm762 = vcmp.ne.s32.totalorder %v760, 0
    %vm763 = vcmp.lt.s32.totalorder %v753, 0
    %vm764 = vcmp.lt.s32.totalorder %v760, 0
    %vm765 = vmand %vm763, %vm761
    %vm766 = vmand %vm764, %vm762
    %v767 = vadd.s32 %v753, 8
    %v768 = vadd.s32 %v760, 8
    %v769 = vsel %vm765, %v767, %v753
    %v770 = vsel %vm766, %v768, %v760
    %vm771 = vcmp.eq.s32.totalorder %v769, 0
    %vm772 = vcmp.eq.s32.totalorder %v770, 0
    %v773 = vsel %vm771, 1, 0
    %v774 = vsel %vm772, 1, 0
    %vm775 = vcmp.eq.s32.totalorder %v773, 1
    %vm776 = vcmp.eq.s32.totalorder %v774, 1
    %v777 = vsel %vm775, 0.0, %v729
    %v778 = vsel %vm776, 0.0, %v726
    %vm779 = vcmp.eq.s32.totalorder %v769, 7
    %vm780 = vcmp.eq.s32.totalorder %v770, 7
    %v781 = vsel %vm779, 1, 0
    %v782 = vsel %vm780, 1, 0
    %vm783 = vcmp.eq.s32.totalorder %v781, 1
    %vm784 = vcmp.eq.s32.totalorder %v782, 1
    %v785 = vsel %vm783, 0.0, %v737
    %v786 = vsel %vm784, 0.0, %v746
    %v787 = vsel %vm719, %v580, %v573
    %v788 = vsel %vm707, %v587, %v787
    %v789 = vsel %vm709, %v594, %v788
    %v790 = vsel %vm711, %v601, %v789
    %v791 = vsel %vm713, %v608, %v790
    %v792 = vsel %vm715, %v615, %v791
    %v793 = vsel %vm717, %v622, %v792
    %v794 = vsel %vm719, %v636, %v629
    %v795 = vsel %vm707, %v643, %v794
    %v796 = vsel %vm709, %v650, %v795
    %v797 = vsel %vm711, %v657, %v796
    %v798 = vsel %vm713, %v664, %v797
    %v799 = vsel %vm715, %v671, %v798
    %v800 = vsel %vm717, %v678, %v799
    %801 = vrot.lane.b32.xlu0 %v793, 32
    %v802 = vpop.permute.xlu0 %801
    %803 = vrot.lane.b32.xlu0 %v800, 32
    %v804 = vpop.permute.xlu0 %803
    %809 = vrot.lane.b32.xlu0 %v785, 64
    %v810 = vpop.permute.xlu0 %809
    %811 = vrot.lane.b32.xlu0 %v786, 64
    %v812 = vpop.permute.xlu0 %811
    %v815 = vsel %vm360, %v777, %v802
    %v816 = vsel %vm360, %v778, %v804
    %v817 = vsel %vm365, %v815, %v810
    %v818 = vsel %vm365, %v816, %v812
    %v820 = vlaneseq
    %v821 = vshrl.u32 %v820, 7
    %v822 = vsub.s32 0, %v821
    %v823 = vrot.slane %v691, %v822
    %v826 = vsel %vm376, %v817, 0
    %v829 = vsel %vm376, %v818, 0
    %831 = vmatprep.subr.mxu0 0.0
    %832 = vmatpush1.msra.mxu0 %v679
    %833 = vmatprep.subr.mxu0 0.0
    %834 = vmatpush1.msra.mxu0 %v680
    %835 = vmatprep.subr.mxu0 0.0
    %836 = vmatpush1.msra.mxu0 %v681
    %837 = vmatprep.subr.mxu0 0.0
    %838 = vmatpush1.msra.mxu0 %v682
    %839 = vmatprep.subr.mxu0 0.0
    %840 = vmatpush1.msra.mxu0 %v683
    %841 = vmatprep.subr.mxu0 0.0
    %842 = vmatpush1.msra.mxu0 %v684
    %843 = vmatprep.subr.mxu0 0.0
    %844 = vmatpush1.msra.mxu0 %v685
    %845 = vmatprep.subr.mxu0 0.0
    %846 = vmatpush1.msra.mxu0 %v686
    %847 = vmatprep.subr.mxu0 0.0
    %848 = vmatpush1.msra.mxu0 %v687
    %849 = vmatprep.subr.mxu0 0.0
    %850 = vmatpush1.msra.mxu0 %v688
    %851 = vmatprep.subr.mxu0 0.0
    %852 = vmatpush1.msra.mxu0 %v689
    %853 = vmatprep.subr.mxu0 0.0
    %854 = vmatpush1.msra.mxu0 %v690
    %855 = vmatprep.subr.mxu0 0.0
    %856 = vmatpush1.msra.mxu0 0.0
    %857 = vmatprep.subr.mxu0 0.0
    %858 = vmatpush1.msra.mxu0 0.0
    %859 = vmatprep.subr.mxu0 0.0
    %860 = vmatpush1.msra.mxu0 0.0
    %861 = vmatprep.subr.mxu0 0.0
    %862 = vmatpush1.msra.mxu0 0.0
    %863 = vmatprep.subr.mxu0 0.0
    %864 = vmatpush1.msra.mxu0 0.0
    %865 = vmatprep.subr.mxu0 0.0
    %866 = vmatpush1.msra.mxu0 0.0
    %867 = vmatprep.subr.mxu0 0.0
    %868 = vmatpush1.msra.mxu0 0.0
    %869 = vmatprep.subr.mxu0 0.0
    %870 = vmatpush1.msra.mxu0 0.0
    %871 = vmatprep.subr.mxu0 0.0
    %872 = vmatpush1.msra.mxu0 0.0
    %873 = vmatprep.subr.mxu0 0.0
    %874 = vmatpush1.msra.mxu0 0.0
    %875 = vmatprep.subr.mxu0 0.0
    %876 = vmatpush1.msra.mxu0 0.0
    %877 = vmatprep.subr.mxu0 0.0
    %878 = vmatpush1.msra.mxu0 0.0
    %879 = vmatprep.subr.mxu0 0.0
    %880 = vmatpush1.msra.mxu0 0.0
    %881 = vmatprep.subr.mxu0 0.0
    %882 = vmatpush1.msra.mxu0 0.0
    %883 = vmatprep.subr.mxu0 0.0
    %884 = vmatpush1.msra.mxu0 0.0
    %885 = vmatprep.subr.mxu0 0.0
    %886 = vmatpush1.msra.mxu0 0.0
    %887 = vmatprep.subr.mxu0 0.0
    %888 = vmatpush1.msra.mxu0 0.0
    %889 = vmatprep.subr.mxu0 0.0
    %890 = vmatpush1.msra.mxu0 0.0
    %891 = vmatprep.subr.mxu0 0.0
    %892 = vmatpush1.msra.mxu0 0.0
    %893 = vmatprep.subr.mxu0 0.0
    %894 = vmatpush1.msra.mxu0 0.0
    %895 = vmatprep.mubr.f32.mxu0 0.0
    %896 = vmatmul.mubr.f32.gmra.mrb[0].mxu0 %v826
    %v897 = vpop.f32.mrb[0].mxu0
    %v898 = vadd.f32 %v823, %v897
    %v899 = vpop.f32.mrb[0].mxu0
    %900 = vmatprep.mubr.f32.mxu0 0.0
    %901 = vmatmul.mubr.f32.gmra.mrb[0].mxu0 %v829
    %v902 = vpop.f32.mrb[0].mxu0
    %v903 = vadd.f32 %v823, %v902
    %v904 = vpop.f32.mrb[0].mxu0
    %905 = vdwg.mxu0
    %v906 = vmax.f32 %v898, 0.0
    %v907 = vmax.f32 %v903, 0.0
    %v908 = vld [vmem:[#allocation4] sm:$0xff]
    %v909 = vld [vmem:[#allocation4 + $0x8] sm:$0xff]
    %v910 = vld [vmem:[#allocation4 + $0x10] sm:$0xff]
    %v911 = vld [vmem:[#allocation4 + $0x18] sm:$0xff]
    %v912 = vld [vmem:[#allocation4 + $0x20] sm:$0xff]
    %v913 = vld [vmem:[#allocation4 + $0x28] sm:$0xff]
    %v914 = vld [vmem:[#allocation4 + $0x30] sm:$0xff]
    %v915 = vld [vmem:[#allocation4 + $0x38] sm:$0xff]
    %v916 = vld [vmem:[#allocation4 + $0x40] sm:$0xff]
    %v917 = vld [vmem:[#allocation4 + $0x48] sm:$0xff]
    %v918 = vld [vmem:[#allocation4 + $0x50] sm:$0xff]
    %v919 = vld [vmem:[#allocation4 + $0x58] sm:$0xff]
    %v920 = vld [vmem:[#allocation4 + $0x60] sm:$0xff]
    %v921 = vld [vmem:[#allocation4 + $0x68] sm:$0xff]
    %v922 = vld [vmem:[#allocation4 + $0x70] sm:$0xff]
    %v923 = vld [vmem:[#allocation4 + $0x78] sm:$0xff]
    %v924 = vld [vmem:[#allocation4 + $0x80] sm:$0xff]
    %v925 = vld [vmem:[#allocation4 + $0x88] sm:$0xff]
    %v926 = vld [vmem:[#allocation4 + $0x90] sm:$0xff]
    %v927 = vld [vmem:[#allocation4 + $0x98] sm:$0xff]
    %v928 = vld [vmem:[#allocation4 + $0xa0] sm:$0xff]
    %v929 = vld [vmem:[#allocation4 + $0xa8] sm:$0xff]
    %v930 = vld [vmem:[#allocation4 + $0xb0] sm:$0xff]
    %v931 = vld [vmem:[#allocation4 + $0xb8] sm:$0xff]
    %v932 = vld [vmem:[%s8] sm:$0x1]
    %v935 = vrot.slane %v906, 7
    %v936 = vrot.slane %v907, 7
    %v937 = vsel %vm69, %v935, %v936
    %v940 = vsel %vm69, 0.0, %v935
    %v941 = vrot.slane %v906, 1
    %v942 = vrot.slane %v907, 1
    %v943 = vsel %vm82, %v941, %v942
    %v946 = vsel %vm82, %v942, 0.0
    %v947 = vsel %vm775, 0.0, %v940
    %v948 = vsel %vm776, 0.0, %v937
    %v949 = vsel %vm783, 0.0, %v943
    %v950 = vsel %vm784, 0.0, %v946
    %951 = vrot.lane.b32.xlu0 %v906, 64
    %v952 = vpop.permute.xlu0 %951
    %953 = vrot.lane.b32.xlu0 %v907, 64
    %v954 = vpop.permute.xlu0 %953
    %v957 = vsel %vm365, %v947, %v952
    %v958 = vsel %vm365, %v948, %v954
    %v960 = vlaneseq
    %v961 = vshrl.u32 %v960, 7
    %v962 = vsub.s32 0, %v961
    %v963 = vrot.slane %v932, %v962
    %v966 = vsel %vm365, %v949, 0
    %v969 = vsel %vm365, %v950, 0
    %971 = vmatprep.subr.mxu0 0.0
    %972 = vmatpush1.msra.mxu0 %v908
    %973 = vmatprep.subr.mxu0 0.0
    %974 = vmatpush1.msra.mxu0 %v909
    %975 = vmatprep.subr.mxu0 0.0
    %976 = vmatpush1.msra.mxu0 %v910
    %977 = vmatprep.subr.mxu0 0.0
    %978 = vmatpush1.msra.mxu0 %v911
    %979 = vmatprep.subr.mxu0 0.0
    %980 = vmatpush1.msra.mxu0 %v912
    %981 = vmatprep.subr.mxu0 0.0
    %982 = vmatpush1.msra.mxu0 %v913
    %983 = vmatprep.subr.mxu0 0.0
    %984 = vmatpush1.msra.mxu0 %v914
    %985 = vmatprep.subr.mxu0 0.0
    %986 = vmatpush1.msra.mxu0 %v915
    %987 = vmatprep.subr.mxu0 0.0
    %988 = vmatpush1.msra.mxu0 %v916
    %989 = vmatprep.subr.mxu0 0.0
    %990 = vmatpush1.msra.mxu0 %v917
    %991 = vmatprep.subr.mxu0 0.0
    %992 = vmatpush1.msra.mxu0 %v918
    %993 = vmatprep.subr.mxu0 0.0
    %994 = vmatpush1.msra.mxu0 %v919
    %995 = vmatprep.subr.mxu0 0.0
    %996 = vmatpush1.msra.mxu0 %v920
    %997 = vmatprep.subr.mxu0 0.0
    %998 = vmatpush1.msra.mxu0 %v921
    %999 = vmatprep.subr.mxu0 0.0
    %1000 = vmatpush1.msra.mxu0 %v922
    %1001 = vmatprep.subr.mxu0 0.0
    %1002 = vmatpush1.msra.mxu0 %v923
    %1003 = vmatprep.subr.mxu0 0.0
    %1004 = vmatpush1.msra.mxu0 %v924
    %1005 = vmatprep.subr.mxu0 0.0
    %1006 = vmatpush1.msra.mxu0 %v925
    %1007 = vmatprep.subr.mxu0 0.0
    %1008 = vmatpush1.msra.mxu0 %v926
    %1009 = vmatprep.subr.mxu0 0.0
    %1010 = vmatpush1.msra.mxu0 %v927
    %1011 = vmatprep.subr.mxu0 0.0
    %1012 = vmatpush1.msra.mxu0 %v928
    %1013 = vmatprep.subr.mxu0 0.0
    %1014 = vmatpush1.msra.mxu0 %v929
    %1015 = vmatprep.subr.mxu0 0.0
    %1016 = vmatpush1.msra.mxu0 %v930
    %1017 = vmatprep.subr.mxu0 0.0
    %1018 = vmatpush1.msra.mxu0 %v931
    %1019 = vmatprep.subr.mxu0 0.0
    %1020 = vmatpush1.msra.mxu0 0.0
    %1021 = vmatprep.subr.mxu0 0.0
    %1022 = vmatpush1.msra.mxu0 0.0
    %1023 = vmatprep.subr.mxu0 0.0
    %1024 = vmatpush1.msra.mxu0 0.0
    %1025 = vmatprep.subr.mxu0 0.0
    %1026 = vmatpush1.msra.mxu0 0.0
    %1027 = vmatprep.subr.mxu0 0.0
    %1028 = vmatpush1.msra.mxu0 0.0
    %1029 = vmatprep.subr.mxu0 0.0
    %1030 = vmatpush1.msra.mxu0 0.0
    %1031 = vmatprep.subr.mxu0 0.0
    %1032 = vmatpush1.msra.mxu0 0.0
    %1033 = vmatprep.subr.mxu0 0.0
    %1034 = vmatpush1.msra.mxu0 0.0
    %1035 = vmatprep.mubr.f32.mxu0 %v966
    %1036 = vmatmul.mubr.f32.gmra.mrb[0].mxu0 %v957
    %v1037 = vpop.f32.mrb[0].mxu0
    %v1038 = vadd.f32 %v963, %v1037
    %v1039 = vpop.f32.mrb[0].mxu0
    %1040 = vmatprep.mubr.f32.mxu0 %v969
    %1041 = vmatmul.mubr.f32.gmra.mrb[0].mxu0 %v958
    %v1042 = vpop.f32.mrb[0].mxu0
    %v1043 = vadd.f32 %v963, %v1042
    %v1044 = vpop.f32.mrb[0].mxu0
    %1045 = vdwg.mxu0
    %v1046 = vmax.f32 %v1038, 0.0
    %v1047 = vmax.f32 %v1043, 0.0
    %v1050 = vcombine.high %v1046, %v1046
    %v1052 = vunpack.c.l.s4 1983009808
    %v1053 = vunpack.c.0.s8 %v1052
    %v1054 = vlaneseq
    %v1055 = vshrl.u32 %v1054, 7
    %v1056 = vsub.s32 %v1053, %v1055
    %v1057 = vrot.slane %v1046, %v1056
    %v1059 = vunpack.c.l.s4 1983009808
    %v1060 = vunpack.c.0.s8 %v1059
    %v1061 = vlaneseq
    %v1062 = vshrl.u32 %v1061, 7
    %v1063 = vsub.s32 %v1060, %v1062
    %v1064 = vrot.slane %v1050, %v1063
    %v1065 = vcombine.high %v1057, %v1057
    %v1066 = vcombine.high %v1064, %v1064
    %v1067 = vcombine.high %v1047, %v1047
    %v1069 = vunpack.c.l.s4 1983009808
    %v1070 = vunpack.c.0.s8 %v1069
    %v1071 = vlaneseq
    %v1072 = vshrl.u32 %v1071, 7
    %v1073 = vsub.s32 %v1070, %v1072
    %v1074 = vrot.slane %v1047, %v1073
    %v1076 = vunpack.c.l.s4 1983009808
    %v1077 = vunpack.c.0.s8 %v1076
    %v1078 = vlaneseq
    %v1079 = vshrl.u32 %v1078, 7
    %v1080 = vsub.s32 %v1077, %v1079
    %v1081 = vrot.slane %v1067, %v1080
    %v1082 = vcombine.high %v1074, %v1074
    %v1083 = vcombine.high %v1081, %v1081
    %vm1092 = vcmask 517120
    %v1093 = vsel %vm1092, %v1057, -inf
    %v1094 = vrot.slane %v1093, 4
    %v1095 = vmax.f32 %v1093, %v1094
    %v1096 = vrot.slane %v1095, 2
    %v1097 = vmax.f32 %v1095, %v1096
    %v1098 = vrot.slane %v1097, 1
    %v1099 = vmax.f32 %v1097, %v1098
    %v1100 = vsel %vm1092, %v1065, -inf
    %v1101 = vrot.slane %v1100, 4
    %v1102 = vmax.f32 %v1100, %v1101
    %v1103 = vrot.slane %v1102, 2
    %v1104 = vmax.f32 %v1102, %v1103
    %v1105 = vrot.slane %v1104, 1
    %v1106 = vmax.f32 %v1104, %v1105
    %v1107 = vsel %vm1092, %v1064, -inf
    %v1108 = vrot.slane %v1107, 4
    %v1109 = vmax.f32 %v1107, %v1108
    %v1110 = vrot.slane %v1109, 2
    %v1111 = vmax.f32 %v1109, %v1110
    %v1112 = vrot.slane %v1111, 1
    %v1113 = vmax.f32 %v1111, %v1112
    %v1114 = vsel %vm1092, %v1066, -inf
    %v1115 = vrot.slane %v1114, 4
    %v1116 = vmax.f32 %v1114, %v1115
    %v1117 = vrot.slane %v1116, 2
    %v1118 = vmax.f32 %v1116, %v1117
    %v1119 = vrot.slane %v1118, 1
    %v1120 = vmax.f32 %v1118, %v1119
    %v1121 = vsel %vm1092, %v1074, -inf
    %v1122 = vrot.slane %v1121, 4
    %v1123 = vmax.f32 %v1121, %v1122
    %v1124 = vrot.slane %v1123, 2
    %v1125 = vmax.f32 %v1123, %v1124
    %v1126 = vrot.slane %v1125, 1
    %v1127 = vmax.f32 %v1125, %v1126
    %v1128 = vsel %vm1092, %v1082, -inf
    %v1129 = vrot.slane %v1128, 4
    %v1130 = vmax.f32 %v1128, %v1129
    %v1131 = vrot.slane %v1130, 2
    %v1132 = vmax.f32 %v1130, %v1131
    %v1133 = vrot.slane %v1132, 1
    %v1134 = vmax.f32 %v1132, %v1133
    %v1135 = vsel %vm1092, %v1081, -inf
    %v1136 = vrot.slane %v1135, 4
    %v1137 = vmax.f32 %v1135, %v1136
    %v1138 = vrot.slane %v1137, 2
    %v1139 = vmax.f32 %v1137, %v1138
    %v1140 = vrot.slane %v1139, 1
    %v1141 = vmax.f32 %v1139, %v1140
    %v1142 = vsel %vm1092, %v1083, -inf
    %v1143 = vrot.slane %v1142, 4
    %v1144 = vmax.f32 %v1142, %v1143
    %v1145 = vrot.slane %v1144, 2
    %v1146 = vmax.f32 %v1144, %v1145
    %v1147 = vrot.slane %v1146, 1
    %v1148 = vmax.f32 %v1146, %v1147
    %v1157 = vsel %vm719, %v1106, %v1099
    %v1158 = vsel %vm707, %v1113, %v1157
    %v1159 = vsel %vm709, %v1120, %v1158
    %v1160 = vsel %vm711, %v1127, %v1159
    %v1161 = vsel %vm713, %v1134, %v1160
    %v1162 = vsel %vm715, %v1141, %v1161
    %v1163 = vsel %vm717, %v1148, %v1162
    %1165 = vst.msk [vmem:[%s9] sm:$0xff] %vm365, %v1163
    // Predicated region
    $region46: #{cnn_ae_forward.4} parent=1 // pred_check
      _
    $region47: #{cnn_ae_forward.4} parent=1 // pred_check_branch
      %1167 = sbr.rel (0) target = $region49
    $region48: #{cnn_ae_forward.4} parent=1 // pred_region
      _
    $region49: #{cnn_ae_forward.4} parent=1 // pred_fallthru
      _
    // Predicated region
    $region50: #{cnn_ae_forward.4} parent=1 // pred_check
      _
    $region51: #{cnn_ae_forward.4} parent=1 // pred_check_branch
      %1169 = sbr.rel (0) target = $region53
    $region52: #{cnn_ae_forward.4} parent=1 // pred_region
      _
    $region53: #{cnn_ae_forward.4} parent=1 // pred_fallthru
      _
    %1170 = vsyncpa [#allocation3], 1
    %1171 = vsyncpa [#allocation5], 1

// kernel: cnn_ae_forward.7
$region0: #{cnn_ae_forward.7}
  #allocation0 [shape = 'u32[]', space=smem, size = 0x4, offset = 0x4, fixed_abs, tag = 'smem constant byte address 0x4 - core index']
  #allocation1 [shape = 'u32[144,128]{1,0:T(1,128)}', space=vmem, size = 0x12000, scoped, tag = 'internal scratch']
  #allocation2 [shape = 'f32[4,2001]{1,0:T(4,128)}', space=vmem, size = 0x8000, scoped, tag = 'scratch operand']
  %s0 = inlined_call_operand.vmem [shape: f32[4,32], index: 0, kind: input, shape index: {}]
  %s1 = inlined_call_operand.vmem [shape: f32[32,2001], index: 1, kind: input, shape index: {}]
  %s2 = inlined_call_operand.vmem [shape: f32[1,2001], index: 2, kind: input, shape index: {}]
  %s3 = inlined_call_operand.hbm [shape: f32[4,2001], index: 3, kind: output, shape index: {}]
  %s4 = sld [smem:[#allocation0]]
  $region30: #{cnn_ae_forward.7} parent=0
    _
  %s6 = ssub.s32 1, %s4
  %s7 = scalar_select 0, %s6, %s4
  $region1: #{cnn_ae_forward.7} parent=0
    #allocation3 [shape = 'u8[32768]{0}', space=vmem, size = 0x8000, scoped, tag = 'output window, operand 0, single buffered']
    #allocation4 [shape = 's32[1]{0}', space=sflag, size = 0x4, scoped, tag = 'scoped memory for cnn_ae_forward.7']
    %8 = vsyncpa [#allocation4], 0
    // Predicated region
    $region2: #{cnn_ae_forward.7} parent=1 // pred_check
      _
    $region3: #{cnn_ae_forward.7} parent=1 // pred_check_branch
      %10 = sbr.rel (0) target = $region5
    $region4: #{cnn_ae_forward.7} parent=1 // pred_region
      _
    $region5: #{cnn_ae_forward.7} parent=1 // pred_fallthru
      _
    // Predicated region
    $region6: #{cnn_ae_forward.7} parent=1 // pred_check
      _
    $region7: #{cnn_ae_forward.7} parent=1 // pred_check_branch
      %12 = sbr.rel (0) target = $region9
    $region8: #{cnn_ae_forward.7} parent=1 // pred_region
      _
    $region9: #{cnn_ae_forward.7} parent=1 // pred_fallthru
      _
    // Predicated region
    $region10: #{cnn_ae_forward.7} parent=1 // pred_check
      _
    $region11: #{cnn_ae_forward.7} parent=1 // pred_check_branch
      %14 = sbr.rel (0) target = $region13
    $region12: #{cnn_ae_forward.7} parent=1 // pred_region
      _
    $region13: #{cnn_ae_forward.7} parent=1 // pred_fallthru
      _
    %p15 = scmp.eq.s32.totalorder 0, 0
    // Predicated region
    $region14: #{cnn_ae_forward.7} parent=1 // pred_check
      %p16 = pneg %p15
    $region15: #{cnn_ae_forward.7} parent=1 // pred_check_branch
      %18 = sbr.rel (%p16) target = $region17
    $region16: #{cnn_ae_forward.7} parent=1 // pred_region
      %19 = vst [vmem:[#allocation2] sm:$0xff] 0.0
      %20 = vst [vmem:[#allocation2 + $0x8] sm:$0xff] 0.0
      %21 = vst [vmem:[#allocation2 + $0x10] sm:$0xff] 0.0
      %22 = vst [vmem:[#allocation2 + $0x18] sm:$0xff] 0.0
      %23 = vst [vmem:[#allocation2 + $0x20] sm:$0xff] 0.0
      %24 = vst [vmem:[#allocation2 + $0x28] sm:$0xff] 0.0
      %25 = vst [vmem:[#allocation2 + $0x30] sm:$0xff] 0.0
      %vm26 = vcmask 1043456
      %vm27 = vcmask 662532
      %vm28 = vmor %vm27, %vm26
      %29 = vst.msk [vmem:[#allocation2 + $0x38] sm:$0xff] %vm28, 0.0
    $region17: #{cnn_ae_forward.7} parent=1 // pred_fallthru
      _
    %v30 = vld [vmem:[#allocation2] sm:$0xff]
    %v31 = vld [vmem:[#allocation2 + $0x8] sm:$0xff]
    %v32 = vld [vmem:[#allocation2 + $0x10] sm:$0xff]
    %v33 = vld [vmem:[#allocation2 + $0x18] sm:$0xff]
    %v34 = vld [vmem:[#allocation2 + $0x20] sm:$0xff]
    %v35 = vld [vmem:[#allocation2 + $0x28] sm:$0xff]
    %v36 = vld [vmem:[#allocation2 + $0x30] sm:$0xff]
    %v37 = vld [vmem:[#allocation2 + $0x38] sm:$0xff]
    %v38 = vld [vmem:[%s0] sm:$0xf]
    %v39 = vld [vmem:[%s1] sm:$0xff]
    %v40 = vld [vmem:[%s1 + $0x8] sm:$0xff]
    %v41 = vld [vmem:[%s1 + $0x10] sm:$0xff]
    %v42 = vld [vmem:[%s1 + $0x18] sm:$0xff]
    %v43 = vld [vmem:[%s1 + $0x20] sm:$0xff]
    %v44 = vld [vmem:[%s1 + $0x28] sm:$0xff]
    %v45 = vld [vmem:[%s1 + $0x30] sm:$0xff]
    %v46 = vld [vmem:[%s1 + $0x38] sm:$0xff]
    %v47 = vld [vmem:[%s1 + $0x40] sm:$0xff]
    %v48 = vld [vmem:[%s1 + $0x48] sm:$0xff]
    %v49 = vld [vmem:[%s1 + $0x50] sm:$0xff]
    %v50 = vld [vmem:[%s1 + $0x58] sm:$0xff]
    %v51 = vld [vmem:[%s1 + $0x60] sm:$0xff]
    %v52 = vld [vmem:[%s1 + $0x68] sm:$0xff]
    %v53 = vld [vmem:[%s1 + $0x70] sm:$0xff]
    %v54 = vld [vmem:[%s1 + $0x78] sm:$0xff]
    %v55 = vld [vmem:[%s1 + $0x80] sm:$0xff]
    %v56 = vld [vmem:[%s1 + $0x88] sm:$0xff]
    %v57 = vld [vmem:[%s1 + $0x90] sm:$0xff]
    %v58 = vld [vmem:[%s1 + $0x98] sm:$0xff]
    %v59 = vld [vmem:[%s1 + $0xa0] sm:$0xff]
    %v60 = vld [vmem:[%s1 + $0xa8] sm:$0xff]
    %v61 = vld [vmem:[%s1 + $0xb0] sm:$0xff]
    %v62 = vld [vmem:[%s1 + $0xb8] sm:$0xff]
    %v63 = vld [vmem:[%s1 + $0xc0] sm:$0xff]
    %v64 = vld [vmem:[%s1 + $0xc8] sm:$0xff]
    %v65 = vld [vmem:[%s1 + $0xd0] sm:$0xff]
    %v66 = vld [vmem:[%s1 + $0xd8] sm:$0xff]
    %v67 = vld [vmem:[%s1 + $0xe0] sm:$0xff]
    %v68 = vld [vmem:[%s1 + $0xe8] sm:$0xff]
    %v69 = vld [vmem:[%s1 + $0xf0] sm:$0xff]
    %v70 = vld [vmem:[%s1 + $0xf8] sm:$0xff]
    %v71 = vld [vmem:[%s1 + $0x100] sm:$0xff]
    %v72 = vld [vmem:[%s1 + $0x108] sm:$0xff]
    %v73 = vld [vmem:[%s1 + $0x110] sm:$0xff]
    %v74 = vld [vmem:[%s1 + $0x118] sm:$0xff]
    %v75 = vld [vmem:[%s1 + $0x120] sm:$0xff]
    %v76 = vld [vmem:[%s1 + $0x128] sm:$0xff]
    %v77 = vld [vmem:[%s1 + $0x130] sm:$0xff]
    %v78 = vld [vmem:[%s1 + $0x138] sm:$0xff]
    %v79 = vld [vmem:[%s1 + $0x140] sm:$0xff]
    %v80 = vld [vmem:[%s1 + $0x148] sm:$0xff]
    %v81 = vld [vmem:[%s1 + $0x150] sm:$0xff]
    %v82 = vld [vmem:[%s1 + $0x158] sm:$0xff]
    %v83 = vld [vmem:[%s1 + $0x160] sm:$0xff]
    %v84 = vld [vmem:[%s1 + $0x168] sm:$0xff]
    %v85 = vld [vmem:[%s1 + $0x170] sm:$0xff]
    %v86 = vld [vmem:[%s1 + $0x178] sm:$0xff]
    %v87 = vld [vmem:[%s1 + $0x180] sm:$0xff]
    %v88 = vld [vmem:[%s1 + $0x188] sm:$0xff]
    %v89 = vld [vmem:[%s1 + $0x190] sm:$0xff]
    %v90 = vld [vmem:[%s1 + $0x198] sm:$0xff]
    %v91 = vld [vmem:[%s1 + $0x1a0] sm:$0xff]
    %v92 = vld [vmem:[%s1 + $0x1a8] sm:$0xff]
    %v93 = vld [vmem:[%s1 + $0x1b0] sm:$0xff]
    %v94 = vld [vmem:[%s1 + $0x1b8] sm:$0xff]
    %v95 = vld [vmem:[%s1 + $0x1c0] sm:$0xff]
    %v96 = vld [vmem:[%s1 + $0x1c8] sm:$0xff]
    %v97 = vld [vmem:[%s1 + $0x1d0] sm:$0xff]
    %v98 = vld [vmem:[%s1 + $0x1d8] sm:$0xff]
    %v99 = vld [vmem:[%s1 + $0x1e0] sm:$0xff]
    %v100 = vld [vmem:[%s1 + $0x1e8] sm:$0xff]
    %v101 = vld [vmem:[%s1 + $0x1f0] sm:$0xff]
    %v102 = vld [vmem:[%s1 + $0x1f8] sm:$0xff]
    %vm103 = vcmask 261120
    %v105 = vsel %vm103, %v38, 0
    %107 = vmatprep.subr.mxu0 %v40
    %108 = vmatpush1.msra.mxu0 %v39
    %109 = vmatprep.subr.mxu0 %v56
    %110 = vmatpush1.msra.mxu0 %v55
    %111 = vmatprep.subr.mxu0 %v72
    %112 = vmatpush1.msra.mxu0 %v71
    %113 = vmatprep.subr.mxu0 %v88
    %114 = vmatpush1.msra.mxu0 %v87
    %115 = vmatprep.subr.mxu0 0.0
    %116 = vmatpush1.msra.mxu0 0.0
    %117 = vmatprep.subr.mxu0 0.0
    %118 = vmatpush1.msra.mxu0 0.0
    %119 = vmatprep.subr.mxu0 0.0
    %120 = vmatpush1.msra.mxu0 0.0
    %121 = vmatprep.subr.mxu0 0.0
    %122 = vmatpush1.msra.mxu0 0.0
    %123 = vmatprep.subr.mxu0 0.0
    %124 = vmatpush1.msra.mxu0 0.0
    %125 = vmatprep.subr.mxu0 0.0
    %126 = vmatpush1.msra.mxu0 0.0
    %127 = vmatprep.subr.mxu0 0.0
    %128 = vmatpush1.msra.mxu0 0.0
    %129 = vmatprep.subr.mxu0 0.0
    %130 = vmatpush1.msra.mxu0 0.0
    %131 = vmatprep.subr.mxu0 0.0
    %132 = vmatpush1.msra.mxu0 0.0
    %133 = vmatprep.subr.mxu0 0.0
    %134 = vmatpush1.msra.mxu0 0.0
    %135 = vmatprep.subr.mxu0 0.0
    %136 = vmatpush1.msra.mxu0 0.0
    %137 = vmatprep.subr.mxu0 0.0
    %138 = vmatpush1.msra.mxu0 0.0
    %139 = vmatprep.subr.mxu0 0.0
    %140 = vmatpush1.msra.mxu0 0.0
    %141 = vmatprep.subr.mxu0 0.0
    %142 = vmatpush1.msra.mxu0 0.0
    %143 = vmatprep.subr.mxu0 0.0
    %144 = vmatpush1.msra.mxu0 0.0
    %145 = vmatprep.subr.mxu0 0.0
    %146 = vmatpush1.msra.mxu0 0.0
    %147 = vmatprep.subr.mxu0 0.0
    %148 = vmatpush1.msra.mxu0 0.0
    %149 = vmatprep.subr.mxu0 0.0
    %150 = vmatpush1.msra.mxu0 0.0
    %151 = vmatprep.subr.mxu0 0.0
    %152 = vmatpush1.msra.mxu0 0.0
    %153 = vmatprep.subr.mxu0 0.0
    %154 = vmatpush1.msra.mxu0 0.0
    %155 = vmatprep.subr.mxu0 0.0
    %156 = vmatpush1.msra.mxu0 0.0
    %157 = vmatprep.subr.mxu0 0.0
    %158 = vmatpush1.msra.mxu0 0.0
    %159 = vmatprep.subr.mxu0 0.0
    %160 = vmatpush1.msra.mxu0 0.0
    %161 = vmatprep.subr.mxu0 0.0
    %162 = vmatpush1.msra.mxu0 0.0
    %163 = vmatprep.subr.mxu0 0.0
    %164 = vmatpush1.msra.mxu0 0.0
    %165 = vmatprep.subr.mxu0 0.0
    %166 = vmatpush1.msra.mxu0 0.0
    %167 = vmatprep.subr.mxu0 0.0
    %168 = vmatpush1.msra.mxu0 0.0
    %169 = vmatprep.subr.mxu0 0.0
    %170 = vmatpush1.msra.mxu0 0.0
    %171 = vmatprep.mubr.f32.mxu0 0.0
    %172 = vmatmul.mubr.f32.gmra.mrb[0].mxu0 %v105
    %v173 = vpop.f32.mrb[0].mxu0
    %v174 = vadd.f32 0.0, %v173
    %v175 = vpop.f32.mrb[0].mxu0
    %v176 = vadd.f32 0.0, %v175
    %177 = vdwg.mxu0
    %178 = vmatprep.subr.mxu0 %v42
    %179 = vmatpush1.msra.mxu0 %v41
    %180 = vmatprep.subr.mxu0 %v58
    %181 = vmatpush1.msra.mxu0 %v57
    %182 = vmatprep.subr.mxu0 %v74
    %183 = vmatpush1.msra.mxu0 %v73
    %184 = vmatprep.subr.mxu0 %v90
    %185 = vmatpush1.msra.mxu0 %v89
    %186 = vmatprep.subr.mxu0 0.0
    %187 = vmatpush1.msra.mxu0 0.0
    %188 = vmatprep.subr.mxu0 0.0
    %189 = vmatpush1.msra.mxu0 0.0
    %190 = vmatprep.subr.mxu0 0.0
    %191 = vmatpush1.msra.mxu0 0.0
    %192 = vmatprep.subr.mxu0 0.0
    %193 = vmatpush1.msra.mxu0 0.0
    %194 = vmatprep.subr.mxu0 0.0
    %195 = vmatpush1.msra.mxu0 0.0
    %196 = vmatprep.subr.mxu0 0.0
    %197 = vmatpush1.msra.mxu0 0.0
    %198 = vmatprep.subr.mxu0 0.0
    %199 = vmatpush1.msra.mxu0 0.0
    %200 = vmatprep.subr.mxu0 0.0
    %201 = vmatpush1.msra.mxu0 0.0
    %202 = vmatprep.subr.mxu0 0.0
    %203 = vmatpush1.msra.mxu0 0.0
    %204 = vmatprep.subr.mxu0 0.0
    %205 = vmatpush1.msra.mxu0 0.0
    %206 = vmatprep.subr.mxu0 0.0
    %207 = vmatpush1.msra.mxu0 0.0
    %208 = vmatprep.subr.mxu0 0.0
    %209 = vmatpush1.msra.mxu0 0.0
    %210 = vmatprep.subr.mxu0 0.0
    %211 = vmatpush1.msra.mxu0 0.0
    %212 = vmatprep.subr.mxu0 0.0
    %213 = vmatpush1.msra.mxu0 0.0
    %214 = vmatprep.subr.mxu0 0.0
    %215 = vmatpush1.msra.mxu0 0.0
    %216 = vmatprep.subr.mxu0 0.0
    %217 = vmatpush1.msra.mxu0 0.0
    %218 = vmatprep.subr.mxu0 0.0
    %219 = vmatpush1.msra.mxu0 0.0
    %220 = vmatprep.subr.mxu0 0.0
    %221 = vmatpush1.msra.mxu0 0.0
    %222 = vmatprep.subr.mxu0 0.0
    %223 = vmatpush1.msra.mxu0 0.0
    %224 = vmatprep.subr.mxu0 0.0
    %225 = vmatpush1.msra.mxu0 0.0
    %226 = vmatprep.subr.mxu0 0.0
    %227 = vmatpush1.msra.mxu0 0.0
    %228 = vmatprep.subr.mxu0 0.0
    %229 = vmatpush1.msra.mxu0 0.0
    %230 = vmatprep.subr.mxu0 0.0
    %231 = vmatpush1.msra.mxu0 0.0
    %232 = vmatprep.subr.mxu0 0.0
    %233 = vmatpush1.msra.mxu0 0.0
    %234 = vmatprep.subr.mxu0 0.0
    %235 = vmatpush1.msra.mxu0 0.0
    %236 = vmatprep.subr.mxu0 0.0
    %237 = vmatpush1.msra.mxu0 0.0
    %238 = vmatprep.subr.mxu0 0.0
    %239 = vmatpush1.msra.mxu0 0.0
    %240 = vmatprep.subr.mxu0 0.0
    %241 = vmatpush1.msra.mxu0 0.0
    %242 = vmatprep.mubr.f32.mxu0 0.0
    %243 = vmatmul.mubr.f32.gmra.mrb[0].mxu0 %v105
    %v244 = vpop.f32.mrb[0].mxu0
    %v245 = vadd.f32 0.0, %v244
    %v246 = vpop.f32.mrb[0].mxu0
    %v247 = vadd.f32 0.0, %v246
    %248 = vdwg.mxu0
    %249 = vmatprep.subr.mxu0 %v44
    %250 = vmatpush1.msra.mxu0 %v43
    %251 = vmatprep.subr.mxu0 %v60
    %252 = vmatpush1.msra.mxu0 %v59
    %253 = vmatprep.subr.mxu0 %v76
    %254 = vmatpush1.msra.mxu0 %v75
    %255 = vmatprep.subr.mxu0 %v92
    %256 = vmatpush1.msra.mxu0 %v91
    %257 = vmatprep.subr.mxu0 0.0
    %258 = vmatpush1.msra.mxu0 0.0
    %259 = vmatprep.subr.mxu0 0.0
    %260 = vmatpush1.msra.mxu0 0.0
    %261 = vmatprep.subr.mxu0 0.0
    %262 = vmatpush1.msra.mxu0 0.0
    %263 = vmatprep.subr.mxu0 0.0
    %264 = vmatpush1.msra.mxu0 0.0
    %265 = vmatprep.subr.mxu0 0.0
    %266 = vmatpush1.msra.mxu0 0.0
    %267 = vmatprep.subr.mxu0 0.0
    %268 = vmatpush1.msra.mxu0 0.0
    %269 = vmatprep.subr.mxu0 0.0
    %270 = vmatpush1.msra.mxu0 0.0
    %271 = vmatprep.subr.mxu0 0.0
    %272 = vmatpush1.msra.mxu0 0.0
    %273 = vmatprep.subr.mxu0 0.0
    %274 = vmatpush1.msra.mxu0 0.0
    %275 = vmatprep.subr.mxu0 0.0
    %276 = vmatpush1.msra.mxu0 0.0
    %277 = vmatprep.subr.mxu0 0.0
    %278 = vmatpush1.msra.mxu0 0.0
    %279 = vmatprep.subr.mxu0 0.0
    %280 = vmatpush1.msra.mxu0 0.0
    %281 = vmatprep.subr.mxu0 0.0
    %282 = vmatpush1.msra.mxu0 0.0
    %283 = vmatprep.subr.mxu0 0.0
    %284 = vmatpush1.msra.mxu0 0.0
    %285 = vmatprep.subr.mxu0 0.0
    %286 = vmatpush1.msra.mxu0 0.0
    %287 = vmatprep.subr.mxu0 0.0
    %288 = vmatpush1.msra.mxu0 0.0
    %289 = vmatprep.subr.mxu0 0.0
    %290 = vmatpush1.msra.mxu0 0.0
    %291 = vmatprep.subr.mxu0 0.0
    %292 = vmatpush1.msra.mxu0 0.0
    %293 = vmatprep.subr.mxu0 0.0
    %294 = vmatpush1.msra.mxu0 0.0
    %295 = vmatprep.subr.mxu0 0.0
    %296 = vmatpush1.msra.mxu0 0.0
    %297 = vmatprep.subr.mxu0 0.0
    %298 = vmatpush1.msra.mxu0 0.0
    %299 = vmatprep.subr.mxu0 0.0
    %300 = vmatpush1.msra.mxu0 0.0
    %301 = vmatprep.subr.mxu0 0.0
    %302 = vmatpush1.msra.mxu0 0.0
    %303 = vmatprep.subr.mxu0 0.0
    %304 = vmatpush1.msra.mxu0 0.0
    %305 = vmatprep.subr.mxu0 0.0
    %306 = vmatpush1.msra.mxu0 0.0
    %307 = vmatprep.subr.mxu0 0.0
    %308 = vmatpush1.msra.mxu0 0.0
    %309 = vmatprep.subr.mxu0 0.0
    %310 = vmatpush1.msra.mxu0 0.0
    %311 = vmatprep.subr.mxu0 0.0
    %312 = vmatpush1.msra.mxu0 0.0
    %313 = vmatprep.mubr.f32.mxu0 0.0
    %314 = vmatmul.mubr.f32.gmra.mrb[0].mxu0 %v105
    %v315 = vpop.f32.mrb[0].mxu0
    %v316 = vadd.f32 0.0, %v315
    %v317 = vpop.f32.mrb[0].mxu0
    %v318 = vadd.f32 0.0, %v317
    %319 = vdwg.mxu0
    %320 = vmatprep.subr.mxu0 %v46
    %321 = vmatpush1.msra.mxu0 %v45
    %322 = vmatprep.subr.mxu0 %v62
    %323 = vmatpush1.msra.mxu0 %v61
    %324 = vmatprep.subr.mxu0 %v78
    %325 = vmatpush1.msra.mxu0 %v77
    %326 = vmatprep.subr.mxu0 %v94
    %327 = vmatpush1.msra.mxu0 %v93
    %328 = vmatprep.subr.mxu0 0.0
    %329 = vmatpush1.msra.mxu0 0.0
    %330 = vmatprep.subr.mxu0 0.0
    %331 = vmatpush1.msra.mxu0 0.0
    %332 = vmatprep.subr.mxu0 0.0
    %333 = vmatpush1.msra.mxu0 0.0
    %334 = vmatprep.subr.mxu0 0.0
    %335 = vmatpush1.msra.mxu0 0.0
    %336 = vmatprep.subr.mxu0 0.0
    %337 = vmatpush1.msra.mxu0 0.0
    %338 = vmatprep.subr.mxu0 0.0
    %339 = vmatpush1.msra.mxu0 0.0
    %340 = vmatprep.subr.mxu0 0.0
    %341 = vmatpush1.msra.mxu0 0.0
    %342 = vmatprep.subr.mxu0 0.0
    %343 = vmatpush1.msra.mxu0 0.0
    %344 = vmatprep.subr.mxu0 0.0
    %345 = vmatpush1.msra.mxu0 0.0
    %346 = vmatprep.subr.mxu0 0.0
    %347 = vmatpush1.msra.mxu0 0.0
    %348 = vmatprep.subr.mxu0 0.0
    %349 = vmatpush1.msra.mxu0 0.0
    %350 = vmatprep.subr.mxu0 0.0
    %351 = vmatpush1.msra.mxu0 0.0
    %352 = vmatprep.subr.mxu0 0.0
    %353 = vmatpush1.msra.mxu0 0.0
    %354 = vmatprep.subr.mxu0 0.0
    %355 = vmatpush1.msra.mxu0 0.0
    %356 = vmatprep.subr.mxu0 0.0
    %357 = vmatpush1.msra.mxu0 0.0
    %358 = vmatprep.subr.mxu0 0.0
    %359 = vmatpush1.msra.mxu0 0.0
    %360 = vmatprep.subr.mxu0 0.0
    %361 = vmatpush1.msra.mxu0 0.0
    %362 = vmatprep.subr.mxu0 0.0
    %363 = vmatpush1.msra.mxu0 0.0
    %364 = vmatprep.subr.mxu0 0.0
    %365 = vmatpush1.msra.mxu0 0.0
    %366 = vmatprep.subr.mxu0 0.0
    %367 = vmatpush1.msra.mxu0 0.0
    %368 = vmatprep.subr.mxu0 0.0
    %369 = vmatpush1.msra.mxu0 0.0
    %370 = vmatprep.subr.mxu0 0.0
    %371 = vmatpush1.msra.mxu0 0.0
    %372 = vmatprep.subr.mxu0 0.0
    %373 = vmatpush1.msra.mxu0 0.0
    %374 = vmatprep.subr.mxu0 0.0
    %375 = vmatpush1.msra.mxu0 0.0
    %376 = vmatprep.subr.mxu0 0.0
    %377 = vmatpush1.msra.mxu0 0.0
    %378 = vmatprep.subr.mxu0 0.0
    %379 = vmatpush1.msra.mxu0 0.0
    %380 = vmatprep.subr.mxu0 0.0
    %381 = vmatpush1.msra.mxu0 0.0
    %382 = vmatprep.subr.mxu0 0.0
    %383 = vmatpush1.msra.mxu0 0.0
    %384 = vmatprep.mubr.f32.mxu0 0.0
    %385 = vmatmul.mubr.f32.gmra.mrb[0].mxu0 %v105
    %v386 = vpop.f32.mrb[0].mxu0
    %v387 = vadd.f32 0.0, %v386
    %v388 = vpop.f32.mrb[0].mxu0
    %v389 = vadd.f32 0.0, %v388
    %390 = vdwg.mxu0
    %391 = vmatprep.subr.mxu0 %v48
    %392 = vmatpush1.msra.mxu0 %v47
    %393 = vmatprep.subr.mxu0 %v64
    %394 = vmatpush1.msra.mxu0 %v63
    %395 = vmatprep.subr.mxu0 %v80
    %396 = vmatpush1.msra.mxu0 %v79
    %397 = vmatprep.subr.mxu0 %v96
    %398 = vmatpush1.msra.mxu0 %v95
    %399 = vmatprep.subr.mxu0 0.0
    %400 = vmatpush1.msra.mxu0 0.0
    %401 = vmatprep.subr.mxu0 0.0
    %402 = vmatpush1.msra.mxu0 0.0
    %403 = vmatprep.subr.mxu0 0.0
    %404 = vmatpush1.msra.mxu0 0.0
    %405 = vmatprep.subr.mxu0 0.0
    %406 = vmatpush1.msra.mxu0 0.0
    %407 = vmatprep.subr.mxu0 0.0
    %408 = vmatpush1.msra.mxu0 0.0
    %409 = vmatprep.subr.mxu0 0.0
    %410 = vmatpush1.msra.mxu0 0.0
    %411 = vmatprep.subr.mxu0 0.0
    %412 = vmatpush1.msra.mxu0 0.0
    %413 = vmatprep.subr.mxu0 0.0
    %414 = vmatpush1.msra.mxu0 0.0
    %415 = vmatprep.subr.mxu0 0.0
    %416 = vmatpush1.msra.mxu0 0.0
    %417 = vmatprep.subr.mxu0 0.0
    %418 = vmatpush1.msra.mxu0 0.0
    %419 = vmatprep.subr.mxu0 0.0
    %420 = vmatpush1.msra.mxu0 0.0
    %421 = vmatprep.subr.mxu0 0.0
    %422 = vmatpush1.msra.mxu0 0.0
    %423 = vmatprep.subr.mxu0 0.0
    %424 = vmatpush1.msra.mxu0 0.0
    %425 = vmatprep.subr.mxu0 0.0
    %426 = vmatpush1.msra.mxu0 0.0
    %427 = vmatprep.subr.mxu0 0.0
    %428 = vmatpush1.msra.mxu0 0.0
    %429 = vmatprep.subr.mxu0 0.0
    %430 = vmatpush1.msra.mxu0 0.0
    %431 = vmatprep.subr.mxu0 0.0
    %432 = vmatpush1.msra.mxu0 0.0
    %433 = vmatprep.subr.mxu0 0.0
    %434 = vmatpush1.msra.mxu0 0.0
    %435 = vmatprep.subr.mxu0 0.0
    %436 = vmatpush1.msra.mxu0 0.0
    %437 = vmatprep.subr.mxu0 0.0
    %438 = vmatpush1.msra.mxu0 0.0
    %439 = vmatprep.subr.mxu0 0.0
    %440 = vmatpush1.msra.mxu0 0.0
    %441 = vmatprep.subr.mxu0 0.0
    %442 = vmatpush1.msra.mxu0 0.0
    %443 = vmatprep.subr.mxu0 0.0
    %444 = vmatpush1.msra.mxu0 0.0
    %445 = vmatprep.subr.mxu0 0.0
    %446 = vmatpush1.msra.mxu0 0.0
    %447 = vmatprep.subr.mxu0 0.0
    %448 = vmatpush1.msra.mxu0 0.0
    %449 = vmatprep.subr.mxu0 0.0
    %450 = vmatpush1.msra.mxu0 0.0
    %451 = vmatprep.subr.mxu0 0.0
    %452 = vmatpush1.msra.mxu0 0.0
    %453 = vmatprep.subr.mxu0 0.0
    %454 = vmatpush1.msra.mxu0 0.0
    %455 = vmatprep.mubr.f32.mxu0 0.0
    %456 = vmatmul.mubr.f32.gmra.mrb[0].mxu0 %v105
    %v457 = vpop.f32.mrb[0].mxu0
    %v458 = vadd.f32 0.0, %v457
    %v459 = vpop.f32.mrb[0].mxu0
    %v460 = vadd.f32 0.0, %v459
    %461 = vdwg.mxu0
    %462 = vmatprep.subr.mxu0 %v50
    %463 = vmatpush1.msra.mxu0 %v49
    %464 = vmatprep.subr.mxu0 %v66
    %465 = vmatpush1.msra.mxu0 %v65
    %466 = vmatprep.subr.mxu0 %v82
    %467 = vmatpush1.msra.mxu0 %v81
    %468 = vmatprep.subr.mxu0 %v98
    %469 = vmatpush1.msra.mxu0 %v97
    %470 = vmatprep.subr.mxu0 0.0
    %471 = vmatpush1.msra.mxu0 0.0
    %472 = vmatprep.subr.mxu0 0.0
    %473 = vmatpush1.msra.mxu0 0.0
    %474 = vmatprep.subr.mxu0 0.0
    %475 = vmatpush1.msra.mxu0 0.0
    %476 = vmatprep.subr.mxu0 0.0
    %477 = vmatpush1.msra.mxu0 0.0
    %478 = vmatprep.subr.mxu0 0.0
    %479 = vmatpush1.msra.mxu0 0.0
    %480 = vmatprep.subr.mxu0 0.0
    %481 = vmatpush1.msra.mxu0 0.0
    %482 = vmatprep.subr.mxu0 0.0
    %483 = vmatpush1.msra.mxu0 0.0
    %484 = vmatprep.subr.mxu0 0.0
    %485 = vmatpush1.msra.mxu0 0.0
    %486 = vmatprep.subr.mxu0 0.0
    %487 = vmatpush1.msra.mxu0 0.0
    %488 = vmatprep.subr.mxu0 0.0
    %489 = vmatpush1.msra.mxu0 0.0
    %490 = vmatprep.subr.mxu0 0.0
    %491 = vmatpush1.msra.mxu0 0.0
    %492 = vmatprep.subr.mxu0 0.0
    %493 = vmatpush1.msra.mxu0 0.0
    %494 = vmatprep.subr.mxu0 0.0
    %495 = vmatpush1.msra.mxu0 0.0
    %496 = vmatprep.subr.mxu0 0.0
    %497 = vmatpush1.msra.mxu0 0.0
    %498 = vmatprep.subr.mxu0 0.0
    %499 = vmatpush1.msra.mxu0 0.0
    %500 = vmatprep.subr.mxu0 0.0
    %501 = vmatpush1.msra.mxu0 0.0
    %502 = vmatprep.subr.mxu0 0.0
    %503 = vmatpush1.msra.mxu0 0.0
    %504 = vmatprep.subr.mxu0 0.0
    %505 = vmatpush1.msra.mxu0 0.0
    %506 = vmatprep.subr.mxu0 0.0
    %507 = vmatpush1.msra.mxu0 0.0
    %508 = vmatprep.subr.mxu0 0.0
    %509 = vmatpush1.msra.mxu0 0.0
    %510 = vmatprep.subr.mxu0 0.0
    %511 = vmatpush1.msra.mxu0 0.0
    %512 = vmatprep.subr.mxu0 0.0
    %513 = vmatpush1.msra.mxu0 0.0
    %514 = vmatprep.subr.mxu0 0.0
    %515 = vmatpush1.msra.mxu0 0.0
    %516 = vmatprep.subr.mxu0 0.0
    %517 = vmatpush1.msra.mxu0 0.0
    %518 = vmatprep.subr.mxu0 0.0
    %519 = vmatpush1.msra.mxu0 0.0
    %520 = vmatprep.subr.mxu0 0.0
    %521 = vmatpush1.msra.mxu0 0.0
    %522 = vmatprep.subr.mxu0 0.0
    %523 = vmatpush1.msra.mxu0 0.0
    %524 = vmatprep.subr.mxu0 0.0
    %525 = vmatpush1.msra.mxu0 0.0
    %526 = vmatprep.mubr.f32.mxu0 0.0
    %527 = vmatmul.mubr.f32.gmra.mrb[0].mxu0 %v105
    %v528 = vpop.f32.mrb[0].mxu0
    %v529 = vadd.f32 0.0, %v528
    %v530 = vpop.f32.mrb[0].mxu0
    %v531 = vadd.f32 0.0, %v530
    %532 = vdwg.mxu0
    %533 = vmatprep.subr.mxu0 %v52
    %534 = vmatpush1.msra.mxu0 %v51
    %535 = vmatprep.subr.mxu0 %v68
    %536 = vmatpush1.msra.mxu0 %v67
    %537 = vmatprep.subr.mxu0 %v84
    %538 = vmatpush1.msra.mxu0 %v83
    %539 = vmatprep.subr.mxu0 %v100
    %540 = vmatpush1.msra.mxu0 %v99
    %541 = vmatprep.subr.mxu0 0.0
    %542 = vmatpush1.msra.mxu0 0.0
    %543 = vmatprep.subr.mxu0 0.0
    %544 = vmatpush1.msra.mxu0 0.0
    %545 = vmatprep.subr.mxu0 0.0
    %546 = vmatpush1.msra.mxu0 0.0
    %547 = vmatprep.subr.mxu0 0.0
    %548 = vmatpush1.msra.mxu0 0.0
    %549 = vmatprep.subr.mxu0 0.0
    %550 = vmatpush1.msra.mxu0 0.0
    %551 = vmatprep.subr.mxu0 0.0
    %552 = vmatpush1.msra.mxu0 0.0
    %553 = vmatprep.subr.mxu0 0.0
    %554 = vmatpush1.msra.mxu0 0.0
    %555 = vmatprep.subr.mxu0 0.0
    %556 = vmatpush1.msra.mxu0 0.0
    %557 = vmatprep.subr.mxu0 0.0
    %558 = vmatpush1.msra.mxu0 0.0
    %559 = vmatprep.subr.mxu0 0.0
    %560 = vmatpush1.msra.mxu0 0.0
    %561 = vmatprep.subr.mxu0 0.0
    %562 = vmatpush1.msra.mxu0 0.0
    %563 = vmatprep.subr.mxu0 0.0
    %564 = vmatpush1.msra.mxu0 0.0
    %565 = vmatprep.subr.mxu0 0.0
    %566 = vmatpush1.msra.mxu0 0.0
    %567 = vmatprep.subr.mxu0 0.0
    %568 = vmatpush1.msra.mxu0 0.0
    %569 = vmatprep.subr.mxu0 0.0
    %570 = vmatpush1.msra.mxu0 0.0
    %571 = vmatprep.subr.mxu0 0.0
    %572 = vmatpush1.msra.mxu0 0.0
    %573 = vmatprep.subr.mxu0 0.0
    %574 = vmatpush1.msra.mxu0 0.0
    %575 = vmatprep.subr.mxu0 0.0
    %576 = vmatpush1.msra.mxu0 0.0
    %577 = vmatprep.subr.mxu0 0.0
    %578 = vmatpush1.msra.mxu0 0.0
    %579 = vmatprep.subr.mxu0 0.0
    %580 = vmatpush1.msra.mxu0 0.0
    %581 = vmatprep.subr.mxu0 0.0
    %582 = vmatpush1.msra.mxu0 0.0
    %583 = vmatprep.subr.mxu0 0.0
    %584 = vmatpush1.msra.mxu0 0.0
    %585 = vmatprep.subr.mxu0 0.0
    %586 = vmatpush1.msra.mxu0 0.0
    %587 = vmatprep.subr.mxu0 0.0
    %588 = vmatpush1.msra.mxu0 0.0
    %589 = vmatprep.subr.mxu0 0.0
    %590 = vmatpush1.msra.mxu0 0.0
    %591 = vmatprep.subr.mxu0 0.0
    %592 = vmatpush1.msra.mxu0 0.0
    %593 = vmatprep.subr.mxu0 0.0
    %594 = vmatpush1.msra.mxu0 0.0
    %595 = vmatprep.subr.mxu0 0.0
    %596 = vmatpush1.msra.mxu0 0.0
    %597 = vmatprep.mubr.f32.mxu0 0.0
    %598 = vmatmul.mubr.f32.gmra.mrb[0].mxu0 %v105
    %v599 = vpop.f32.mrb[0].mxu0
    %v600 = vadd.f32 0.0, %v599
    %v601 = vpop.f32.mrb[0].mxu0
    %v602 = vadd.f32 0.0, %v601
    %603 = vdwg.mxu0
    %604 = vmatprep.subr.mxu0 %v54
    %605 = vmatpush1.msra.mxu0 %v53
    %606 = vmatprep.subr.mxu0 %v70
    %607 = vmatpush1.msra.mxu0 %v69
    %608 = vmatprep.subr.mxu0 %v86
    %609 = vmatpush1.msra.mxu0 %v85
    %610 = vmatprep.subr.mxu0 %v102
    %611 = vmatpush1.msra.mxu0 %v101
    %612 = vmatprep.subr.mxu0 0.0
    %613 = vmatpush1.msra.mxu0 0.0
    %614 = vmatprep.subr.mxu0 0.0
    %615 = vmatpush1.msra.mxu0 0.0
    %616 = vmatprep.subr.mxu0 0.0
    %617 = vmatpush1.msra.mxu0 0.0
    %618 = vmatprep.subr.mxu0 0.0
    %619 = vmatpush1.msra.mxu0 0.0
    %620 = vmatprep.subr.mxu0 0.0
    %621 = vmatpush1.msra.mxu0 0.0
    %622 = vmatprep.subr.mxu0 0.0
    %623 = vmatpush1.msra.mxu0 0.0
    %624 = vmatprep.subr.mxu0 0.0
    %625 = vmatpush1.msra.mxu0 0.0
    %626 = vmatprep.subr.mxu0 0.0
    %627 = vmatpush1.msra.mxu0 0.0
    %628 = vmatprep.subr.mxu0 0.0
    %629 = vmatpush1.msra.mxu0 0.0
    %630 = vmatprep.subr.mxu0 0.0
    %631 = vmatpush1.msra.mxu0 0.0
    %632 = vmatprep.subr.mxu0 0.0
    %633 = vmatpush1.msra.mxu0 0.0
    %634 = vmatprep.subr.mxu0 0.0
    %635 = vmatpush1.msra.mxu0 0.0
    %636 = vmatprep.subr.mxu0 0.0
    %637 = vmatpush1.msra.mxu0 0.0
    %638 = vmatprep.subr.mxu0 0.0
    %639 = vmatpush1.msra.mxu0 0.0
    %640 = vmatprep.subr.mxu0 0.0
    %641 = vmatpush1.msra.mxu0 0.0
    %642 = vmatprep.subr.mxu0 0.0
    %643 = vmatpush1.msra.mxu0 0.0
    %644 = vmatprep.subr.mxu0 0.0
    %645 = vmatpush1.msra.mxu0 0.0
    %646 = vmatprep.subr.mxu0 0.0
    %647 = vmatpush1.msra.mxu0 0.0
    %648 = vmatprep.subr.mxu0 0.0
    %649 = vmatpush1.msra.mxu0 0.0
    %650 = vmatprep.subr.mxu0 0.0
    %651 = vmatpush1.msra.mxu0 0.0
    %652 = vmatprep.subr.mxu0 0.0
    %653 = vmatpush1.msra.mxu0 0.0
    %654 = vmatprep.subr.mxu0 0.0
    %655 = vmatpush1.msra.mxu0 0.0
    %656 = vmatprep.subr.mxu0 0.0
    %657 = vmatpush1.msra.mxu0 0.0
    %658 = vmatprep.subr.mxu0 0.0
    %659 = vmatpush1.msra.mxu0 0.0
    %660 = vmatprep.subr.mxu0 0.0
    %661 = vmatpush1.msra.mxu0 0.0
    %662 = vmatprep.subr.mxu0 0.0
    %663 = vmatpush1.msra.mxu0 0.0
    %664 = vmatprep.subr.mxu0 0.0
    %665 = vmatpush1.msra.mxu0 0.0
    %666 = vmatprep.subr.mxu0 0.0
    %667 = vmatpush1.msra.mxu0 0.0
    %668 = vmatprep.mubr.f32.mxu0 0.0
    %669 = vmatmul.mubr.f32.gmra.mrb[0].mxu0 %v105
    %v670 = vpop.f32.mrb[0].mxu0
    %v671 = vadd.f32 0.0, %v670
    %v672 = vpop.f32.mrb[0].mxu0
    %v673 = vadd.f32 0.0, %v672
    %674 = vdwg.mxu0
    %v691 = vcombine.low %v174, %v176
    %v692 = vcombine.low %v245, %v247
    %v693 = vcombine.low %v316, %v318
    %v694 = vcombine.low %v387, %v389
    %v695 = vcombine.low %v458, %v460
    %v696 = vcombine.low %v529, %v531
    %v697 = vcombine.low %v600, %v602
    %v698 = vcombine.low %v671, %v673
    %v707 = vadd.f32 %v30, %v691
    %v708 = vadd.f32 %v31, %v692
    %v709 = vadd.f32 %v32, %v693
    %v710 = vadd.f32 %v33, %v694
    %v711 = vadd.f32 %v34, %v695
    %v712 = vadd.f32 %v35, %v696
    %v713 = vadd.f32 %v36, %v697
    %v714 = vadd.f32 %v37, %v698
    %715 = vst [vmem:[#allocation2] sm:$0xff] %v707
    %716 = vst [vmem:[#allocation2 + $0x8] sm:$0xff] %v708
    %717 = vst [vmem:[#allocation2 + $0x10] sm:$0xff] %v709
    %718 = vst [vmem:[#allocation2 + $0x18] sm:$0xff] %v710
    %719 = vst [vmem:[#allocation2 + $0x20] sm:$0xff] %v711
    %720 = vst [vmem:[#allocation2 + $0x28] sm:$0xff] %v712
    %721 = vst [vmem:[#allocation2 + $0x30] sm:$0xff] %v713
    %vm722 = vcmask 1043456
    %vm723 = vcmask 662532
    %vm724 = vmor %vm723, %vm722
    %725 = vst.msk [vmem:[#allocation2 + $0x38] sm:$0xff] %vm724, %v714
    // Predicated region
    $region18: #{cnn_ae_forward.7} parent=1 // pred_check
      %p726 = pneg %p15
    $region19: #{cnn_ae_forward.7} parent=1 // pred_check_branch
      %728 = sbr.rel (%p726) target = $region21
    $region20: #{cnn_ae_forward.7} parent=1 // pred_region
      %v729 = vld [vmem:[#allocation2] sm:$0xff]
      %v730 = vld [vmem:[#allocation2 + $0x8] sm:$0xff]
      %v731 = vld [vmem:[#allocation2 + $0x10] sm:$0xff]
      %v732 = vld [vmem:[#allocation2 + $0x18] sm:$0xff]
      %v733 = vld [vmem:[#allocation2 + $0x20] sm:$0xff]
      %v734 = vld [vmem:[#allocation2 + $0x28] sm:$0xff]
      %v735 = vld [vmem:[#allocation2 + $0x30] sm:$0xff]
      %v736 = vld [vmem:[#allocation2 + $0x38] sm:$0xff]
      %v737 = vld [vmem:[%s2] sm:$0xff]
      %v738 = vld [vmem:[%s2 + $0x8] sm:$0xff]
      %v741 = vlaneseq
      %v742 = vshrl.u32 %v741, 7
      %v743 = vsub.s32 0, %v742
      %v744 = vrot.slane %v737, %v743
      %v745 = vlaneseq
      %v746 = vshrl.u32 %v745, 7
      %v747 = vsub.s32 1, %v746
      %v748 = vrot.slane %v737, %v747
      %v749 = vlaneseq
      %v750 = vshrl.u32 %v749, 7
      %v751 = vsub.s32 2, %v750
      %v752 = vrot.slane %v737, %v751
      %v753 = vlaneseq
      %v754 = vshrl.u32 %v753, 7
      %v755 = vsub.s32 3, %v754
      %v756 = vrot.slane %v737, %v755
      %v757 = vlaneseq
      %v758 = vshrl.u32 %v757, 7
      %v759 = vsub.s32 4, %v758
      %v760 = vrot.slane %v737, %v759
      %v761 = vlaneseq
      %v762 = vshrl.u32 %v761, 7
      %v763 = vsub.s32 5, %v762
      %v764 = vrot.slane %v737, %v763
      %v765 = vlaneseq
      %v766 = vshrl.u32 %v765, 7
      %v767 = vsub.s32 6, %v766
      %v768 = vrot.slane %v737, %v767
      %v769 = vlaneseq
      %v770 = vshrl.u32 %v769, 7
      %v771 = vsub.s32 7, %v770
      %v772 = vrot.slane %v737, %v771
      %v773 = vlaneseq
      %v774 = vshrl.u32 %v773, 7
      %v775 = vsub.s32 0, %v774
      %v776 = vrot.slane %v738, %v775
      %v777 = vlaneseq
      %v778 = vshrl.u32 %v777, 7
      %v779 = vsub.s32 1, %v778
      %v780 = vrot.slane %v738, %v779
      %v781 = vlaneseq
      %v782 = vshrl.u32 %v781, 7
      %v783 = vsub.s32 2, %v782
      %v784 = vrot.slane %v738, %v783
      %v785 = vlaneseq
      %v786 = vshrl.u32 %v785, 7
      %v787 = vsub.s32 3, %v786
      %v788 = vrot.slane %v738, %v787
      %v789 = vlaneseq
      %v790 = vshrl.u32 %v789, 7
      %v791 = vsub.s32 4, %v790
      %v792 = vrot.slane %v738, %v791
      %v793 = vlaneseq
      %v794 = vshrl.u32 %v793, 7
      %v795 = vsub.s32 5, %v794
      %v796 = vrot.slane %v738, %v795
      %v797 = vlaneseq
      %v798 = vshrl.u32 %v797, 7
      %v799 = vsub.s32 6, %v798
      %v800 = vrot.slane %v738, %v799
      %v801 = vlaneseq
      %v802 = vshrl.u32 %v801, 7
      %v803 = vsub.s32 7, %v802
      %v804 = vrot.slane %v738, %v803
      %v805 = vcombine.low %v744, %v748
      %v806 = vcombine.low %v752, %v756
      %v807 = vcombine.low %v760, %v764
      %v808 = vcombine.low %v768, %v772
      %v809 = vcombine.low %v776, %v780
      %v810 = vcombine.low %v784, %v788
      %v811 = vcombine.low %v792, %v796
      %v812 = vcombine.low %v800, %v804
      %v821 = vadd.f32 %v729, %v805
      %v822 = vadd.f32 %v730, %v806
      %v823 = vadd.f32 %v731, %v807
      %v824 = vadd.f32 %v732, %v808
      %v825 = vadd.f32 %v733, %v809
      %v826 = vadd.f32 %v734, %v810
      %v827 = vadd.f32 %v735, %v811
      %v828 = vadd.f32 %v736, %v812
      %829 = vst [vmem:[#allocation3] sm:$0xff] %v821
      %830 = vst [vmem:[#allocation3 + $0x8] sm:$0xff] %v822
      %831 = vst [vmem:[#allocation3 + $0x10] sm:$0xff] %v823
      %832 = vst [vmem:[#allocation3 + $0x18] sm:$0xff] %v824
      %833 = vst [vmem:[#allocation3 + $0x20] sm:$0xff] %v825
      %834 = vst [vmem:[#allocation3 + $0x28] sm:$0xff] %v826
      %835 = vst [vmem:[#allocation3 + $0x30] sm:$0xff] %v827
      %836 = vst.msk [vmem:[#allocation3 + $0x38] sm:$0xff] %vm724, %v828
    $region21: #{cnn_ae_forward.7} parent=1 // pred_fallthru
      _
    // Predicated region
    $region22: #{cnn_ae_forward.7} parent=1 // pred_check
      _
    $region23: #{cnn_ae_forward.7} parent=1 // pred_check_branch
      %838 = sbr.rel (0) target = $region25
    $region24: #{cnn_ae_forward.7} parent=1 // pred_region
      %s840 = ssub.s32 1024, 1024
      %841 = vsyncadd [#allocation4], %s840
      %s843 = sshll.u32 [#allocation3], 4
      %s844 = int_to_ptr.vmem [resolvable:$true] %s843
      %846 = dma.vmem_to_hbm [thread:$0]  %s844, 1024, %s3, [#allocation4]
    $region25: #{cnn_ae_forward.7} parent=1 // pred_fallthru
      _
    // Predicated region
    $region26: #{cnn_ae_forward.7} parent=1 // pred_check
      _
    $region27: #{cnn_ae_forward.7} parent=1 // pred_check_branch
      %848 = sbr.rel (0) target = $region29
    $region28: #{cnn_ae_forward.7} parent=1 // pred_region
      %849 = dma.done [#allocation4], 1024
    $region29: #{cnn_ae_forward.7} parent=1 // pred_fallthru
      _
    %850 = vsyncpa [#allocation4], 1

</llo_original>
